<compile_context>
chip_gen: v7x
topology: tpu7x:2x2x1
jax: 0.10.0
libtpu: 0.0.40
codegen_flags: <defaults>
</compile_context>

<pallas_src>
import jax
import jax.numpy as jnp
from jax.experimental import pallas as pl
from jax.experimental.pallas import tpu as pltpu


def lstm_decoder_kernel(z_ref, wih_ref, whh_ref, b_ref, wlin_ref, blin_ref,
                        out_ref, hs_ref):
    B = z_ref.shape[0]
    Hp = whh_ref.shape[0]             # hidden size padded to 128 lanes per gate
    seq_len = hs_ref.shape[0] // B

    # The latent is identical at every timestep (unsqueeze + repeat in
    # PyTorch), so the input->gate projection + bias is computed once, outside
    # the recurrence.  bf16 operands feed the MXU; accumulation stays f32.
    x_gates = jnp.dot(z_ref[...].astype(jnp.bfloat16), wih_ref[...],
                      preferred_element_type=jnp.float32) + b_ref[...]   # (B, 4Hp) f32

    h = jnp.zeros((B, Hp), jnp.bfloat16)   # h only feeds the MXU / hs store
    c = jnp.zeros((B, Hp), jnp.float32)    # cell state stays f32 (VPU/EUP path)

    # seq_len is static & tiny: fully unroll with static indices so every hs
    # store lowers to a plain (masked) vector store and the scheduler can
    # overlap them with the next step's MXU feed.
    # TODO(synk): switch to a partially-unrolled lax.fori_loop (unroll=4) if
    # seq_len grows beyond ~16.
    for t in range(seq_len):
        # Re-read W_hh from VMEM each step rather than pinning ~32 vregs of
        # bf16 weights across the whole unrolled loop (spill risk on the
        # serial critical path); vld slots are cheap.
        gates = x_gates + jnp.dot(h, whh_ref[...],
                                  preferred_element_type=jnp.float32)    # (B, 4Hp) f32
        # Gate slices are full-vreg (128-lane) aligned; padded lanes stay 0.
        i = jax.nn.sigmoid(gates[:, 0 * Hp:1 * Hp])
        f = jax.nn.sigmoid(gates[:, 1 * Hp:2 * Hp])
        g = jnp.tanh(gates[:, 2 * Hp:3 * Hp])
        o = jax.nn.sigmoid(gates[:, 3 * Hp:4 * Hp])
        c = f * c + i * g
        h = (o * jnp.tanh(c)).astype(jnp.bfloat16)
        # Stash h_t in (b, t) row order (row = b*seq_len + t).  These stores
        # are off the serial dependence chain (next step only needs `h`).
        for bi in range(B):
            hs_ref[pl.ds(bi * seq_len + t, 1), :] = h[bi:bi + 1, :]

    # Output head (Linear -> Sigmoid) applied once over all B*seq_len rows:
    # a single MXU push of (B*T, Hp)x(Hp, Op), one sigmoid, one dense
    # lane-aligned full-block store.  Rows are already in (b, t) order.
    y = jnp.dot(hs_ref[...], wlin_ref[...],
                preferred_element_type=jnp.float32) + blin_ref[...]      # (B*T, Op) f32
    out_ref[...] = jax.nn.sigmoid(y).astype(out_ref.dtype)


def lstm_decoder_forward(z, params, seq_len, output_size):
    """z: (B, E) float32. Returns (B, seq_len * output_size) float32."""
    w_ih_t, w_hh_t, b, w_lin_t, b_lin = params
    B = z.shape[0]
    Hp = w_hh_t.shape[0]
    Op = w_lin_t.shape[1]              # lane-padded output width (multiple of 128)

    vmem = pl.BlockSpec(memory_space=pltpu.MemorySpace.VMEM)
    # VMEM residency: ~192 KiB of bf16 weights + 4 KiB bf16 hs scratch + 8 KiB
    # output — far under the scoped default on v5e/v6e/v7x.  When scaling
    # B/H/seq_len, prefer a batch grid axis (also engages v7x's 2nd TC) over
    # raising vmem_limit_bytes; v7x has half the physical VMEM of v5e/v6e.
    out = pl.pallas_call(
        lstm_decoder_kernel,
        out_shape=jax.ShapeDtypeStruct((B * seq_len, Op), jnp.float32),
        in_specs=[vmem] * 6,
        out_specs=vmem,
        scratch_shapes=[pltpu.VMEM((B * seq_len, Hp), jnp.bfloat16)],
    )(z, w_ih_t, w_hh_t, b, w_lin_t, b_lin)

    # Rows are already ordered (b, t); dropping the padded lanes and reshaping
    # to (B, seq_len*output_size) is a contiguous view — matches PyTorch's
    # `out.view(-1, seq_len * output_size)`.
    return out[:, :output_size].reshape(B, seq_len * output_size)


def init_params(key, embedding_size, output_size):
    """Deterministic init mirroring nn.LSTM / nn.Linear (gate order i,f,g,o).
    Each gate block is zero-padded from H to Hp (multiple of 128 lanes), the
    output head is zero-padded from output_size to Op (multiple of 128 lanes),
    and matmul weights are stored in bf16 (biases stay f32)."""
    E = embedding_size
    H = 2 * embedding_size                     # nn.LSTM hidden_size
    Hp = ((H + 127) // 128) * 128              # pad each gate to full vregs
    Op = ((output_size + 127) // 128) * 128    # lane-dense output width
    k = 1.0 / jnp.sqrt(jnp.float32(H))
    keys = jax.random.split(key, 6)
    w_ih = jax.random.uniform(keys[0], (4 * H, E), jnp.float32, -k, k)
    w_hh = jax.random.uniform(keys[1], (4 * H, H), jnp.float32, -k, k)
    b_ih = jax.random.uniform(keys[2], (4 * H,), jnp.float32, -k, k)
    b_hh = jax.random.uniform(keys[3], (4 * H,), jnp.float32, -k, k)
    w_lin = jax.random.uniform(keys[4], (output_size, H), jnp.float32, -k, k)
    b_lin = jax.random.uniform(keys[5], (output_size,), jnp.float32, -k, k)

    def pad_gate_cols(w):                      # (rows, 4H) -> (rows, 4Hp)
        parts = jnp.split(w, 4, axis=1)
        return jnp.concatenate(
            [jnp.pad(p, ((0, 0), (0, Hp - H))) for p in parts], axis=1)

    w_ih_t = pad_gate_cols(w_ih.T)                                    # (E, 4Hp)
    w_hh_t = pad_gate_cols(jnp.pad(w_hh.T, ((0, Hp - H), (0, 0))))    # (Hp, 4Hp)
    b = pad_gate_cols((b_ih + b_hh)[None, :])                         # (1, 4Hp)
    w_lin_t = jnp.pad(w_lin.T,
                      ((0, Hp - H), (0, Op - output_size)))           # (Hp, Op)
    b_lin_p = jnp.pad(b_lin[None, :],
                      ((0, 0), (0, Op - output_size)))                # (1, Op)

    return (
        w_ih_t.astype(jnp.bfloat16),
        w_hh_t.astype(jnp.bfloat16),
        b,                                  # f32: stays on the VPU/EUP path
        w_lin_t.astype(jnp.bfloat16),
        b_lin_p,                            # f32
    )


if __name__ == "__main__":
    batch = 2
    embedding_size = 32        # hidden_size = 64, padded to Hp = 128
    seq_len = 8
    output_size = 16           # padded to Op = 128 inside the kernel

    key = jax.random.PRNGKey(0)
    k_z, k_p = jax.random.split(key)
    z = jax.random.normal(k_z, (batch, embedding_size), jnp.float32)
    params = init_params(k_p, embedding_size, output_size)

    out = lstm_decoder_forward(z, params, seq_len, output_size)
    jax.block_until_ready(out)
    assert out.shape == (batch, seq_len * output_size)
    assert bool(jnp.all(jnp.isfinite(out)))
    assert bool(jnp.all((out > 0.0) & (out < 1.0)))   # sigmoid range sanity
    print("KERNEL_OK")
</pallas_src>

<mosaic_0001>
module attributes {stable_mosaic.version = 11 : i64} {
  func.func @lstm_decoder_kernel(%arg0: memref<2x32xf32, #tpu.memory_space<vmem>>, %arg1: memref<32x512xbf16, #tpu.memory_space<vmem>>, %arg2: memref<128x512xbf16, #tpu.memory_space<vmem>>, %arg3: memref<1x512xf32, #tpu.memory_space<vmem>>, %arg4: memref<128x128xbf16, #tpu.memory_space<vmem>>, %arg5: memref<1x128xf32, #tpu.memory_space<vmem>>, %arg6: memref<16x128xf32, #tpu.memory_space<vmem>>, %arg7: memref<16x128xbf16, #tpu.memory_space<vmem>>) attributes {dimension_semantics = [], scalar_prefetch = 0 : i64, scratch_operands = 1 : i64, tpu.core_type = #tpu.core_type<tc>} {
    %c0 = arith.constant 0 : index
    %c0_0 = arith.constant 0 : index
    %0 = vector.load %arg0[%c0, %c0_0] : memref<2x32xf32, #tpu.memory_space<vmem>>, vector<2x32xf32>
    %1 = arith.truncf %0 : vector<2x32xf32> to vector<2x32xbf16>
    %c0_1 = arith.constant 0 : index
    %c0_2 = arith.constant 0 : index
    %2 = vector.load %arg1[%c0_1, %c0_2] : memref<32x512xbf16, #tpu.memory_space<vmem>>, vector<32x512xbf16>
    %cst = arith.constant dense<0.000000e+00> : vector<2x512xf32>
    %3 = tpu.matmul %1, %2, %cst {dimension_numbers = #tpu.dot_dimension_numbers<[1], [0], [0], [1], [0, 0, 1, 1], [], []>} : vector<2x32xbf16>, vector<32x512xbf16>, vector<2x512xf32> -> vector<2x512xf32>
    %c0_3 = arith.constant 0 : index
    %c0_4 = arith.constant 0 : index
    %4 = vector.load %arg3[%c0_3, %c0_4] : memref<1x512xf32, #tpu.memory_space<vmem>>, vector<1x512xf32>
    %5 = vector.broadcast %4 : vector<1x512xf32> to vector<2x512xf32>
    %6 = arith.addf %3, %5 : vector<2x512xf32>
    %cst_5 = arith.constant 0.000000e+00 : bf16
    %7 = vector.broadcast %cst_5 : bf16 to vector<2x128xbf16>
    %cst_6 = arith.constant 0.000000e+00 : f32
    %8 = vector.broadcast %cst_6 : f32 to vector<2x128xf32>
    %c0_7 = arith.constant 0 : index
    %c0_8 = arith.constant 0 : index
    %9 = vector.load %arg2[%c0_7, %c0_8] : memref<128x512xbf16, #tpu.memory_space<vmem>>, vector<128x512xbf16>
    %cst_9 = arith.constant dense<0.000000e+00> : vector<2x512xf32>
    %10 = tpu.matmul %7, %9, %cst_9 {dimension_numbers = #tpu.dot_dimension_numbers<[1], [0], [0], [1], [0, 0, 1, 1], [], []>} : vector<2x128xbf16>, vector<128x512xbf16>, vector<2x512xf32> -> vector<2x512xf32>
    %11 = arith.addf %6, %10 : vector<2x512xf32>
    %12 = vector.extract_strided_slice %11 {offsets = [0, 0], sizes = [2, 128], strides = [1, 1]} : vector<2x512xf32> to vector<2x128xf32>
    %13 = arith.negf %12 : vector<2x128xf32>
    %14 = math.exp %13 : vector<2x128xf32>
    %cst_10 = arith.constant 1.000000e+00 : f32
    %15 = vector.broadcast %cst_10 : f32 to vector<2x128xf32>
    %16 = arith.addf %15, %14 : vector<2x128xf32>
    %17 = arith.divf %15, %16 : vector<2x128xf32>
    %18 = vector.extract_strided_slice %11 {offsets = [0, 128], sizes = [2, 128], strides = [1, 1]} : vector<2x512xf32> to vector<2x128xf32>
    %19 = arith.negf %18 : vector<2x128xf32>
    %20 = math.exp %19 : vector<2x128xf32>
    %cst_11 = arith.constant 1.000000e+00 : f32
    %21 = vector.broadcast %cst_11 : f32 to vector<2x128xf32>
    %22 = arith.addf %21, %20 : vector<2x128xf32>
    %23 = arith.divf %21, %22 : vector<2x128xf32>
    %24 = vector.extract_strided_slice %11 {offsets = [0, 256], sizes = [2, 128], strides = [1, 1]} : vector<2x512xf32> to vector<2x128xf32>
    %25 = math.tanh %24 : vector<2x128xf32>
    %26 = vector.extract_strided_slice %11 {offsets = [0, 384], sizes = [2, 128], strides = [1, 1]} : vector<2x512xf32> to vector<2x128xf32>
    %27 = arith.negf %26 : vector<2x128xf32>
    %28 = math.exp %27 : vector<2x128xf32>
    %cst_12 = arith.constant 1.000000e+00 : f32
    %29 = vector.broadcast %cst_12 : f32 to vector<2x128xf32>
    %30 = arith.addf %29, %28 : vector<2x128xf32>
    %31 = arith.divf %29, %30 : vector<2x128xf32>
    %32 = arith.mulf %23, %8 : vector<2x128xf32>
    %33 = arith.mulf %17, %25 : vector<2x128xf32>
    %34 = arith.addf %32, %33 : vector<2x128xf32>
    %35 = math.tanh %34 : vector<2x128xf32>
    %36 = arith.mulf %31, %35 : vector<2x128xf32>
    %37 = arith.truncf %36 : vector<2x128xf32> to vector<2x128xbf16>
    %38 = vector.extract_strided_slice %37 {offsets = [0, 0], sizes = [1, 128], strides = [1, 1]} : vector<2x128xbf16> to vector<1x128xbf16>
    %c0_13 = arith.constant 0 : index
    %c0_14 = arith.constant 0 : index
    %39 = vector.load %arg7[%c0_13, %c0_14] : memref<16x128xbf16, #tpu.memory_space<vmem>>, vector<1x128xbf16>
    tpu.vector_store %arg7[%c0_13, %c0_14], %38 {strides = array<i32>} : memref<16x128xbf16, #tpu.memory_space<vmem>>, vector<1x128xbf16>,
    %40 = vector.extract_strided_slice %37 {offsets = [1, 0], sizes = [1, 128], strides = [1, 1]} : vector<2x128xbf16> to vector<1x128xbf16>
    %c8 = arith.constant 8 : index
    %c0_15 = arith.constant 0 : index
    %41 = vector.load %arg7[%c8, %c0_15] : memref<16x128xbf16, #tpu.memory_space<vmem>>, vector<1x128xbf16>
    tpu.vector_store %arg7[%c8, %c0_15], %40 {strides = array<i32>} : memref<16x128xbf16, #tpu.memory_space<vmem>>, vector<1x128xbf16>,
    %c0_16 = arith.constant 0 : index
    %c0_17 = arith.constant 0 : index
    %42 = vector.load %arg2[%c0_16, %c0_17] : memref<128x512xbf16, #tpu.memory_space<vmem>>, vector<128x512xbf16>
    %cst_18 = arith.constant dense<0.000000e+00> : vector<2x512xf32>
    %43 = tpu.matmul %37, %42, %cst_18 {dimension_numbers = #tpu.dot_dimension_numbers<[1], [0], [0], [1], [0, 0, 1, 1], [], []>} : vector<2x128xbf16>, vector<128x512xbf16>, vector<2x512xf32> -> vector<2x512xf32>
    %44 = arith.addf %6, %43 : vector<2x512xf32>
    %45 = vector.extract_strided_slice %44 {offsets = [0, 0], sizes = [2, 128], strides = [1, 1]} : vector<2x512xf32> to vector<2x128xf32>
    %46 = arith.negf %45 : vector<2x128xf32>
    %47 = math.exp %46 : vector<2x128xf32>
    %cst_19 = arith.constant 1.000000e+00 : f32
    %48 = vector.broadcast %cst_19 : f32 to vector<2x128xf32>
    %49 = arith.addf %48, %47 : vector<2x128xf32>
    %50 = arith.divf %48, %49 : vector<2x128xf32>
    %51 = vector.extract_strided_slice %44 {offsets = [0, 128], sizes = [2, 128], strides = [1, 1]} : vector<2x512xf32> to vector<2x128xf32>
    %52 = arith.negf %51 : vector<2x128xf32>
    %53 = math.exp %52 : vector<2x128xf32>
    %cst_20 = arith.constant 1.000000e+00 : f32
    %54 = vector.broadcast %cst_20 : f32 to vector<2x128xf32>
    %55 = arith.addf %54, %53 : vector<2x128xf32>
    %56 = arith.divf %54, %55 : vector<2x128xf32>
    %57 = vector.extract_strided_slice %44 {offsets = [0, 256], sizes = [2, 128], strides = [1, 1]} : vector<2x512xf32> to vector<2x128xf32>
    %58 = math.tanh %57 : vector<2x128xf32>
    %59 = vector.extract_strided_slice %44 {offsets = [0, 384], sizes = [2, 128], strides = [1, 1]} : vector<2x512xf32> to vector<2x128xf32>
    %60 = arith.negf %59 : vector<2x128xf32>
    %61 = math.exp %60 : vector<2x128xf32>
    %cst_21 = arith.constant 1.000000e+00 : f32
    %62 = vector.broadcast %cst_21 : f32 to vector<2x128xf32>
    %63 = arith.addf %62, %61 : vector<2x128xf32>
    %64 = arith.divf %62, %63 : vector<2x128xf32>
    %65 = arith.mulf %56, %34 : vector<2x128xf32>
    %66 = arith.mulf %50, %58 : vector<2x128xf32>
    %67 = arith.addf %65, %66 : vector<2x128xf32>
    %68 = math.tanh %67 : vector<2x128xf32>
    %69 = arith.mulf %64, %68 : vector<2x128xf32>
    %70 = arith.truncf %69 : vector<2x128xf32> to vector<2x128xbf16>
    %71 = vector.extract_strided_slice %70 {offsets = [0, 0], sizes = [1, 128], strides = [1, 1]} : vector<2x128xbf16> to vector<1x128xbf16>
    %c1 = arith.constant 1 : index
    %c0_22 = arith.constant 0 : index
    %72 = vector.load %arg7[%c1, %c0_22] : memref<16x128xbf16, #tpu.memory_space<vmem>>, vector<1x128xbf16>
    tpu.vector_store %arg7[%c1, %c0_22], %71 {strides = array<i32>} : memref<16x128xbf16, #tpu.memory_space<vmem>>, vector<1x128xbf16>,
    %73 = vector.extract_strided_slice %70 {offsets = [1, 0], sizes = [1, 128], strides = [1, 1]} : vector<2x128xbf16> to vector<1x128xbf16>
    %c9 = arith.constant 9 : index
    %c0_23 = arith.constant 0 : index
    %74 = vector.load %arg7[%c9, %c0_23] : memref<16x128xbf16, #tpu.memory_space<vmem>>, vector<1x128xbf16>
    tpu.vector_store %arg7[%c9, %c0_23], %73 {strides = array<i32>} : memref<16x128xbf16, #tpu.memory_space<vmem>>, vector<1x128xbf16>,
    %c0_24 = arith.constant 0 : index
    %c0_25 = arith.constant 0 : index
    %75 = vector.load %arg2[%c0_24, %c0_25] : memref<128x512xbf16, #tpu.memory_space<vmem>>, vector<128x512xbf16>
    %cst_26 = arith.constant dense<0.000000e+00> : vector<2x512xf32>
    %76 = tpu.matmul %70, %75, %cst_26 {dimension_numbers = #tpu.dot_dimension_numbers<[1], [0], [0], [1], [0, 0, 1, 1], [], []>} : vector<2x128xbf16>, vector<128x512xbf16>, vector<2x512xf32> -> vector<2x512xf32>
    %77 = arith.addf %6, %76 : vector<2x512xf32>
    %78 = vector.extract_strided_slice %77 {offsets = [0, 0], sizes = [2, 128], strides = [1, 1]} : vector<2x512xf32> to vector<2x128xf32>
    %79 = arith.negf %78 : vector<2x128xf32>
    %80 = math.exp %79 : vector<2x128xf32>
    %cst_27 = arith.constant 1.000000e+00 : f32
    %81 = vector.broadcast %cst_27 : f32 to vector<2x128xf32>
    %82 = arith.addf %81, %80 : vector<2x128xf32>
    %83 = arith.divf %81, %82 : vector<2x128xf32>
    %84 = vector.extract_strided_slice %77 {offsets = [0, 128], sizes = [2, 128], strides = [1, 1]} : vector<2x512xf32> to vector<2x128xf32>
    %85 = arith.negf %84 : vector<2x128xf32>
    %86 = math.exp %85 : vector<2x128xf32>
    %cst_28 = arith.constant 1.000000e+00 : f32
    %87 = vector.broadcast %cst_28 : f32 to vector<2x128xf32>
    %88 = arith.addf %87, %86 : vector<2x128xf32>
    %89 = arith.divf %87, %88 : vector<2x128xf32>
    %90 = vector.extract_strided_slice %77 {offsets = [0, 256], sizes = [2, 128], strides = [1, 1]} : vector<2x512xf32> to vector<2x128xf32>
    %91 = math.tanh %90 : vector<2x128xf32>
    %92 = vector.extract_strided_slice %77 {offsets = [0, 384], sizes = [2, 128], strides = [1, 1]} : vector<2x512xf32> to vector<2x128xf32>
    %93 = arith.negf %92 : vector<2x128xf32>
    %94 = math.exp %93 : vector<2x128xf32>
    %cst_29 = arith.constant 1.000000e+00 : f32
    %95 = vector.broadcast %cst_29 : f32 to vector<2x128xf32>
    %96 = arith.addf %95, %94 : vector<2x128xf32>
    %97 = arith.divf %95, %96 : vector<2x128xf32>
    %98 = arith.mulf %89, %67 : vector<2x128xf32>
    %99 = arith.mulf %83, %91 : vector<2x128xf32>
    %100 = arith.addf %98, %99 : vector<2x128xf32>
    %101 = math.tanh %100 : vector<2x128xf32>
    %102 = arith.mulf %97, %101 : vector<2x128xf32>
    %103 = arith.truncf %102 : vector<2x128xf32> to vector<2x128xbf16>
    %104 = vector.extract_strided_slice %103 {offsets = [0, 0], sizes = [1, 128], strides = [1, 1]} : vector<2x128xbf16> to vector<1x128xbf16>
    %c2 = arith.constant 2 : index
    %c0_30 = arith.constant 0 : index
    %105 = vector.load %arg7[%c2, %c0_30] : memref<16x128xbf16, #tpu.memory_space<vmem>>, vector<1x128xbf16>
    tpu.vector_store %arg7[%c2, %c0_30], %104 {strides = array<i32>} : memref<16x128xbf16, #tpu.memory_space<vmem>>, vector<1x128xbf16>,
    %106 = vector.extract_strided_slice %103 {offsets = [1, 0], sizes = [1, 128], strides = [1, 1]} : vector<2x128xbf16> to vector<1x128xbf16>
    %c10 = arith.constant 10 : index
    %c0_31 = arith.constant 0 : index
    %107 = vector.load %arg7[%c10, %c0_31] : memref<16x128xbf16, #tpu.memory_space<vmem>>, vector<1x128xbf16>
    tpu.vector_store %arg7[%c10, %c0_31], %106 {strides = array<i32>} : memref<16x128xbf16, #tpu.memory_space<vmem>>, vector<1x128xbf16>,
    %c0_32 = arith.constant 0 : index
    %c0_33 = arith.constant 0 : index
    %108 = vector.load %arg2[%c0_32, %c0_33] : memref<128x512xbf16, #tpu.memory_space<vmem>>, vector<128x512xbf16>
    %cst_34 = arith.constant dense<0.000000e+00> : vector<2x512xf32>
    %109 = tpu.matmul %103, %108, %cst_34 {dimension_numbers = #tpu.dot_dimension_numbers<[1], [0], [0], [1], [0, 0, 1, 1], [], []>} : vector<2x128xbf16>, vector<128x512xbf16>, vector<2x512xf32> -> vector<2x512xf32>
    %110 = arith.addf %6, %109 : vector<2x512xf32>
    %111 = vector.extract_strided_slice %110 {offsets = [0, 0], sizes = [2, 128], strides = [1, 1]} : vector<2x512xf32> to vector<2x128xf32>
    %112 = arith.negf %111 : vector<2x128xf32>
    %113 = math.exp %112 : vector<2x128xf32>
    %cst_35 = arith.constant 1.000000e+00 : f32
    %114 = vector.broadcast %cst_35 : f32 to vector<2x128xf32>
    %115 = arith.addf %114, %113 : vector<2x128xf32>
    %116 = arith.divf %114, %115 : vector<2x128xf32>
    %117 = vector.extract_strided_slice %110 {offsets = [0, 128], sizes = [2, 128], strides = [1, 1]} : vector<2x512xf32> to vector<2x128xf32>
    %118 = arith.negf %117 : vector<2x128xf32>
    %119 = math.exp %118 : vector<2x128xf32>
    %cst_36 = arith.constant 1.000000e+00 : f32
    %120 = vector.broadcast %cst_36 : f32 to vector<2x128xf32>
    %121 = arith.addf %120, %119 : vector<2x128xf32>
    %122 = arith.divf %120, %121 : vector<2x128xf32>
    %123 = vector.extract_strided_slice %110 {offsets = [0, 256], sizes = [2, 128], strides = [1, 1]} : vector<2x512xf32> to vector<2x128xf32>
    %124 = math.tanh %123 : vector<2x128xf32>
    %125 = vector.extract_strided_slice %110 {offsets = [0, 384], sizes = [2, 128], strides = [1, 1]} : vector<2x512xf32> to vector<2x128xf32>
    %126 = arith.negf %125 : vector<2x128xf32>
    %127 = math.exp %126 : vector<2x128xf32>
    %cst_37 = arith.constant 1.000000e+00 : f32
    %128 = vector.broadcast %cst_37 : f32 to vector<2x128xf32>
    %129 = arith.addf %128, %127 : vector<2x128xf32>
    %130 = arith.divf %128, %129 : vector<2x128xf32>
    %131 = arith.mulf %122, %100 : vector<2x128xf32>
    %132 = arith.mulf %116, %124 : vector<2x128xf32>
    %133 = arith.addf %131, %132 : vector<2x128xf32>
    %134 = math.tanh %133 : vector<2x128xf32>
    %135 = arith.mulf %130, %134 : vector<2x128xf32>
    %136 = arith.truncf %135 : vector<2x128xf32> to vector<2x128xbf16>
    %137 = vector.extract_strided_slice %136 {offsets = [0, 0], sizes = [1, 128], strides = [1, 1]} : vector<2x128xbf16> to vector<1x128xbf16>
    %c3 = arith.constant 3 : index
    %c0_38 = arith.constant 0 : index
    %138 = vector.load %arg7[%c3, %c0_38] : memref<16x128xbf16, #tpu.memory_space<vmem>>, vector<1x128xbf16>
    tpu.vector_store %arg7[%c3, %c0_38], %137 {strides = array<i32>} : memref<16x128xbf16, #tpu.memory_space<vmem>>, vector<1x128xbf16>,
    %139 = vector.extract_strided_slice %136 {offsets = [1, 0], sizes = [1, 128], strides = [1, 1]} : vector<2x128xbf16> to vector<1x128xbf16>
    %c11 = arith.constant 11 : index
    %c0_39 = arith.constant 0 : index
    %140 = vector.load %arg7[%c11, %c0_39] : memref<16x128xbf16, #tpu.memory_space<vmem>>, vector<1x128xbf16>
    tpu.vector_store %arg7[%c11, %c0_39], %139 {strides = array<i32>} : memref<16x128xbf16, #tpu.memory_space<vmem>>, vector<1x128xbf16>,
    %c0_40 = arith.constant 0 : index
    %c0_41 = arith.constant 0 : index
    %141 = vector.load %arg2[%c0_40, %c0_41] : memref<128x512xbf16, #tpu.memory_space<vmem>>, vector<128x512xbf16>
    %cst_42 = arith.constant dense<0.000000e+00> : vector<2x512xf32>
    %142 = tpu.matmul %136, %141, %cst_42 {dimension_numbers = #tpu.dot_dimension_numbers<[1], [0], [0], [1], [0, 0, 1, 1], [], []>} : vector<2x128xbf16>, vector<128x512xbf16>, vector<2x512xf32> -> vector<2x512xf32>
    %143 = arith.addf %6, %142 : vector<2x512xf32>
    %144 = vector.extract_strided_slice %143 {offsets = [0, 0], sizes = [2, 128], strides = [1, 1]} : vector<2x512xf32> to vector<2x128xf32>
    %145 = arith.negf %144 : vector<2x128xf32>
    %146 = math.exp %145 : vector<2x128xf32>
    %cst_43 = arith.constant 1.000000e+00 : f32
    %147 = vector.broadcast %cst_43 : f32 to vector<2x128xf32>
    %148 = arith.addf %147, %146 : vector<2x128xf32>
    %149 = arith.divf %147, %148 : vector<2x128xf32>
    %150 = vector.extract_strided_slice %143 {offsets = [0, 128], sizes = [2, 128], strides = [1, 1]} : vector<2x512xf32> to vector<2x128xf32>
    %151 = arith.negf %150 : vector<2x128xf32>
    %152 = math.exp %151 : vector<2x128xf32>
    %cst_44 = arith.constant 1.000000e+00 : f32
    %153 = vector.broadcast %cst_44 : f32 to vector<2x128xf32>
    %154 = arith.addf %153, %152 : vector<2x128xf32>
    %155 = arith.divf %153, %154 : vector<2x128xf32>
    %156 = vector.extract_strided_slice %143 {offsets = [0, 256], sizes = [2, 128], strides = [1, 1]} : vector<2x512xf32> to vector<2x128xf32>
    %157 = math.tanh %156 : vector<2x128xf32>
    %158 = vector.extract_strided_slice %143 {offsets = [0, 384], sizes = [2, 128], strides = [1, 1]} : vector<2x512xf32> to vector<2x128xf32>
    %159 = arith.negf %158 : vector<2x128xf32>
    %160 = math.exp %159 : vector<2x128xf32>
    %cst_45 = arith.constant 1.000000e+00 : f32
    %161 = vector.broadcast %cst_45 : f32 to vector<2x128xf32>
    %162 = arith.addf %161, %160 : vector<2x128xf32>
    %163 = arith.divf %161, %162 : vector<2x128xf32>
    %164 = arith.mulf %155, %133 : vector<2x128xf32>
    %165 = arith.mulf %149, %157 : vector<2x128xf32>
    %166 = arith.addf %164, %165 : vector<2x128xf32>
    %167 = math.tanh %166 : vector<2x128xf32>
    %168 = arith.mulf %163, %167 : vector<2x128xf32>
    %169 = arith.truncf %168 : vector<2x128xf32> to vector<2x128xbf16>
    %170 = vector.extract_strided_slice %169 {offsets = [0, 0], sizes = [1, 128], strides = [1, 1]} : vector<2x128xbf16> to vector<1x128xbf16>
    %c4 = arith.constant 4 : index
    %c0_46 = arith.constant 0 : index
    %171 = vector.load %arg7[%c4, %c0_46] : memref<16x128xbf16, #tpu.memory_space<vmem>>, vector<1x128xbf16>
    tpu.vector_store %arg7[%c4, %c0_46], %170 {strides = array<i32>} : memref<16x128xbf16, #tpu.memory_space<vmem>>, vector<1x128xbf16>,
    %172 = vector.extract_strided_slice %169 {offsets = [1, 0], sizes = [1, 128], strides = [1, 1]} : vector<2x128xbf16> to vector<1x128xbf16>
    %c12 = arith.constant 12 : index
    %c0_47 = arith.constant 0 : index
    %173 = vector.load %arg7[%c12, %c0_47] : memref<16x128xbf16, #tpu.memory_space<vmem>>, vector<1x128xbf16>
    tpu.vector_store %arg7[%c12, %c0_47], %172 {strides = array<i32>} : memref<16x128xbf16, #tpu.memory_space<vmem>>, vector<1x128xbf16>,
    %c0_48 = arith.constant 0 : index
    %c0_49 = arith.constant 0 : index
    %174 = vector.load %arg2[%c0_48, %c0_49] : memref<128x512xbf16, #tpu.memory_space<vmem>>, vector<128x512xbf16>
    %cst_50 = arith.constant dense<0.000000e+00> : vector<2x512xf32>
    %175 = tpu.matmul %169, %174, %cst_50 {dimension_numbers = #tpu.dot_dimension_numbers<[1], [0], [0], [1], [0, 0, 1, 1], [], []>} : vector<2x128xbf16>, vector<128x512xbf16>, vector<2x512xf32> -> vector<2x512xf32>
    %176 = arith.addf %6, %175 : vector<2x512xf32>
    %177 = vector.extract_strided_slice %176 {offsets = [0, 0], sizes = [2, 128], strides = [1, 1]} : vector<2x512xf32> to vector<2x128xf32>
    %178 = arith.negf %177 : vector<2x128xf32>
    %179 = math.exp %178 : vector<2x128xf32>
    %cst_51 = arith.constant 1.000000e+00 : f32
    %180 = vector.broadcast %cst_51 : f32 to vector<2x128xf32>
    %181 = arith.addf %180, %179 : vector<2x128xf32>
    %182 = arith.divf %180, %181 : vector<2x128xf32>
    %183 = vector.extract_strided_slice %176 {offsets = [0, 128], sizes = [2, 128], strides = [1, 1]} : vector<2x512xf32> to vector<2x128xf32>
    %184 = arith.negf %183 : vector<2x128xf32>
    %185 = math.exp %184 : vector<2x128xf32>
    %cst_52 = arith.constant 1.000000e+00 : f32
    %186 = vector.broadcast %cst_52 : f32 to vector<2x128xf32>
    %187 = arith.addf %186, %185 : vector<2x128xf32>
    %188 = arith.divf %186, %187 : vector<2x128xf32>
    %189 = vector.extract_strided_slice %176 {offsets = [0, 256], sizes = [2, 128], strides = [1, 1]} : vector<2x512xf32> to vector<2x128xf32>
    %190 = math.tanh %189 : vector<2x128xf32>
    %191 = vector.extract_strided_slice %176 {offsets = [0, 384], sizes = [2, 128], strides = [1, 1]} : vector<2x512xf32> to vector<2x128xf32>
    %192 = arith.negf %191 : vector<2x128xf32>
    %193 = math.exp %192 : vector<2x128xf32>
    %cst_53 = arith.constant 1.000000e+00 : f32
    %194 = vector.broadcast %cst_53 : f32 to vector<2x128xf32>
    %195 = arith.addf %194, %193 : vector<2x128xf32>
    %196 = arith.divf %194, %195 : vector<2x128xf32>
    %197 = arith.mulf %188, %166 : vector<2x128xf32>
    %198 = arith.mulf %182, %190 : vector<2x128xf32>
    %199 = arith.addf %197, %198 : vector<2x128xf32>
    %200 = math.tanh %199 : vector<2x128xf32>
    %201 = arith.mulf %196, %200 : vector<2x128xf32>
    %202 = arith.truncf %201 : vector<2x128xf32> to vector<2x128xbf16>
    %203 = vector.extract_strided_slice %202 {offsets = [0, 0], sizes = [1, 128], strides = [1, 1]} : vector<2x128xbf16> to vector<1x128xbf16>
    %c5 = arith.constant 5 : index
    %c0_54 = arith.constant 0 : index
    %204 = vector.load %arg7[%c5, %c0_54] : memref<16x128xbf16, #tpu.memory_space<vmem>>, vector<1x128xbf16>
    tpu.vector_store %arg7[%c5, %c0_54], %203 {strides = array<i32>} : memref<16x128xbf16, #tpu.memory_space<vmem>>, vector<1x128xbf16>,
    %205 = vector.extract_strided_slice %202 {offsets = [1, 0], sizes = [1, 128], strides = [1, 1]} : vector<2x128xbf16> to vector<1x128xbf16>
    %c13 = arith.constant 13 : index
    %c0_55 = arith.constant 0 : index
    %206 = vector.load %arg7[%c13, %c0_55] : memref<16x128xbf16, #tpu.memory_space<vmem>>, vector<1x128xbf16>
    tpu.vector_store %arg7[%c13, %c0_55], %205 {strides = array<i32>} : memref<16x128xbf16, #tpu.memory_space<vmem>>, vector<1x128xbf16>,
    %c0_56 = arith.constant 0 : index
    %c0_57 = arith.constant 0 : index
    %207 = vector.load %arg2[%c0_56, %c0_57] : memref<128x512xbf16, #tpu.memory_space<vmem>>, vector<128x512xbf16>
    %cst_58 = arith.constant dense<0.000000e+00> : vector<2x512xf32>
    %208 = tpu.matmul %202, %207, %cst_58 {dimension_numbers = #tpu.dot_dimension_numbers<[1], [0], [0], [1], [0, 0, 1, 1], [], []>} : vector<2x128xbf16>, vector<128x512xbf16>, vector<2x512xf32> -> vector<2x512xf32>
    %209 = arith.addf %6, %208 : vector<2x512xf32>
    %210 = vector.extract_strided_slice %209 {offsets = [0, 0], sizes = [2, 128], strides = [1, 1]} : vector<2x512xf32> to vector<2x128xf32>
    %211 = arith.negf %210 : vector<2x128xf32>
    %212 = math.exp %211 : vector<2x128xf32>
    %cst_59 = arith.constant 1.000000e+00 : f32
    %213 = vector.broadcast %cst_59 : f32 to vector<2x128xf32>
    %214 = arith.addf %213, %212 : vector<2x128xf32>
    %215 = arith.divf %213, %214 : vector<2x128xf32>
    %216 = vector.extract_strided_slice %209 {offsets = [0, 128], sizes = [2, 128], strides = [1, 1]} : vector<2x512xf32> to vector<2x128xf32>
    %217 = arith.negf %216 : vector<2x128xf32>
    %218 = math.exp %217 : vector<2x128xf32>
    %cst_60 = arith.constant 1.000000e+00 : f32
    %219 = vector.broadcast %cst_60 : f32 to vector<2x128xf32>
    %220 = arith.addf %219, %218 : vector<2x128xf32>
    %221 = arith.divf %219, %220 : vector<2x128xf32>
    %222 = vector.extract_strided_slice %209 {offsets = [0, 256], sizes = [2, 128], strides = [1, 1]} : vector<2x512xf32> to vector<2x128xf32>
    %223 = math.tanh %222 : vector<2x128xf32>
    %224 = vector.extract_strided_slice %209 {offsets = [0, 384], sizes = [2, 128], strides = [1, 1]} : vector<2x512xf32> to vector<2x128xf32>
    %225 = arith.negf %224 : vector<2x128xf32>
    %226 = math.exp %225 : vector<2x128xf32>
    %cst_61 = arith.constant 1.000000e+00 : f32
    %227 = vector.broadcast %cst_61 : f32 to vector<2x128xf32>
    %228 = arith.addf %227, %226 : vector<2x128xf32>
    %229 = arith.divf %227, %228 : vector<2x128xf32>
    %230 = arith.mulf %221, %199 : vector<2x128xf32>
    %231 = arith.mulf %215, %223 : vector<2x128xf32>
    %232 = arith.addf %230, %231 : vector<2x128xf32>
    %233 = math.tanh %232 : vector<2x128xf32>
    %234 = arith.mulf %229, %233 : vector<2x128xf32>
    %235 = arith.truncf %234 : vector<2x128xf32> to vector<2x128xbf16>
    %236 = vector.extract_strided_slice %235 {offsets = [0, 0], sizes = [1, 128], strides = [1, 1]} : vector<2x128xbf16> to vector<1x128xbf16>
    %c6 = arith.constant 6 : index
    %c0_62 = arith.constant 0 : index
    %237 = vector.load %arg7[%c6, %c0_62] : memref<16x128xbf16, #tpu.memory_space<vmem>>, vector<1x128xbf16>
    tpu.vector_store %arg7[%c6, %c0_62], %236 {strides = array<i32>} : memref<16x128xbf16, #tpu.memory_space<vmem>>, vector<1x128xbf16>,
    %238 = vector.extract_strided_slice %235 {offsets = [1, 0], sizes = [1, 128], strides = [1, 1]} : vector<2x128xbf16> to vector<1x128xbf16>
    %c14 = arith.constant 14 : index
    %c0_63 = arith.constant 0 : index
    %239 = vector.load %arg7[%c14, %c0_63] : memref<16x128xbf16, #tpu.memory_space<vmem>>, vector<1x128xbf16>
    tpu.vector_store %arg7[%c14, %c0_63], %238 {strides = array<i32>} : memref<16x128xbf16, #tpu.memory_space<vmem>>, vector<1x128xbf16>,
    %c0_64 = arith.constant 0 : index
    %c0_65 = arith.constant 0 : index
    %240 = vector.load %arg2[%c0_64, %c0_65] : memref<128x512xbf16, #tpu.memory_space<vmem>>, vector<128x512xbf16>
    %cst_66 = arith.constant dense<0.000000e+00> : vector<2x512xf32>
    %241 = tpu.matmul %235, %240, %cst_66 {dimension_numbers = #tpu.dot_dimension_numbers<[1], [0], [0], [1], [0, 0, 1, 1], [], []>} : vector<2x128xbf16>, vector<128x512xbf16>, vector<2x512xf32> -> vector<2x512xf32>
    %242 = arith.addf %6, %241 : vector<2x512xf32>
    %243 = vector.extract_strided_slice %242 {offsets = [0, 0], sizes = [2, 128], strides = [1, 1]} : vector<2x512xf32> to vector<2x128xf32>
    %244 = arith.negf %243 : vector<2x128xf32>
    %245 = math.exp %244 : vector<2x128xf32>
    %cst_67 = arith.constant 1.000000e+00 : f32
    %246 = vector.broadcast %cst_67 : f32 to vector<2x128xf32>
    %247 = arith.addf %246, %245 : vector<2x128xf32>
    %248 = arith.divf %246, %247 : vector<2x128xf32>
    %249 = vector.extract_strided_slice %242 {offsets = [0, 128], sizes = [2, 128], strides = [1, 1]} : vector<2x512xf32> to vector<2x128xf32>
    %250 = arith.negf %249 : vector<2x128xf32>
    %251 = math.exp %250 : vector<2x128xf32>
    %cst_68 = arith.constant 1.000000e+00 : f32
    %252 = vector.broadcast %cst_68 : f32 to vector<2x128xf32>
    %253 = arith.addf %252, %251 : vector<2x128xf32>
    %254 = arith.divf %252, %253 : vector<2x128xf32>
    %255 = vector.extract_strided_slice %242 {offsets = [0, 256], sizes = [2, 128], strides = [1, 1]} : vector<2x512xf32> to vector<2x128xf32>
    %256 = math.tanh %255 : vector<2x128xf32>
    %257 = vector.extract_strided_slice %242 {offsets = [0, 384], sizes = [2, 128], strides = [1, 1]} : vector<2x512xf32> to vector<2x128xf32>
    %258 = arith.negf %257 : vector<2x128xf32>
    %259 = math.exp %258 : vector<2x128xf32>
    %cst_69 = arith.constant 1.000000e+00 : f32
    %260 = vector.broadcast %cst_69 : f32 to vector<2x128xf32>
    %261 = arith.addf %260, %259 : vector<2x128xf32>
    %262 = arith.divf %260, %261 : vector<2x128xf32>
    %263 = arith.mulf %254, %232 : vector<2x128xf32>
    %264 = arith.mulf %248, %256 : vector<2x128xf32>
    %265 = arith.addf %263, %264 : vector<2x128xf32>
    %266 = math.tanh %265 : vector<2x128xf32>
    %267 = arith.mulf %262, %266 : vector<2x128xf32>
    %268 = arith.truncf %267 : vector<2x128xf32> to vector<2x128xbf16>
    %269 = vector.extract_strided_slice %268 {offsets = [0, 0], sizes = [1, 128], strides = [1, 1]} : vector<2x128xbf16> to vector<1x128xbf16>
    %c7 = arith.constant 7 : index
    %c0_70 = arith.constant 0 : index
    %270 = vector.load %arg7[%c7, %c0_70] : memref<16x128xbf16, #tpu.memory_space<vmem>>, vector<1x128xbf16>
    tpu.vector_store %arg7[%c7, %c0_70], %269 {strides = array<i32>} : memref<16x128xbf16, #tpu.memory_space<vmem>>, vector<1x128xbf16>,
    %271 = vector.extract_strided_slice %268 {offsets = [1, 0], sizes = [1, 128], strides = [1, 1]} : vector<2x128xbf16> to vector<1x128xbf16>
    %c15 = arith.constant 15 : index
    %c0_71 = arith.constant 0 : index
    %272 = vector.load %arg7[%c15, %c0_71] : memref<16x128xbf16, #tpu.memory_space<vmem>>, vector<1x128xbf16>
    tpu.vector_store %arg7[%c15, %c0_71], %271 {strides = array<i32>} : memref<16x128xbf16, #tpu.memory_space<vmem>>, vector<1x128xbf16>,
    %c0_72 = arith.constant 0 : index
    %c0_73 = arith.constant 0 : index
    %273 = vector.load %arg7[%c0_72, %c0_73] : memref<16x128xbf16, #tpu.memory_space<vmem>>, vector<16x128xbf16>
    %c0_74 = arith.constant 0 : index
    %c0_75 = arith.constant 0 : index
    %274 = vector.load %arg4[%c0_74, %c0_75] : memref<128x128xbf16, #tpu.memory_space<vmem>>, vector<128x128xbf16>
    %cst_76 = arith.constant dense<0.000000e+00> : vector<16x128xf32>
    %275 = tpu.matmul %273, %274, %cst_76 {dimension_numbers = #tpu.dot_dimension_numbers<[1], [0], [0], [1], [0, 0, 1, 1], [], []>} : vector<16x128xbf16>, vector<128x128xbf16>, vector<16x128xf32> -> vector<16x128xf32>
    %c0_77 = arith.constant 0 : index
    %c0_78 = arith.constant 0 : index
    %276 = vector.load %arg5[%c0_77, %c0_78] : memref<1x128xf32, #tpu.memory_space<vmem>>, vector<1x128xf32>
    %277 = vector.broadcast %276 : vector<1x128xf32> to vector<16x128xf32>
    %278 = arith.addf %275, %277 : vector<16x128xf32>
    %279 = arith.negf %278 : vector<16x128xf32>
    %280 = math.exp %279 : vector<16x128xf32>
    %cst_79 = arith.constant 1.000000e+00 : f32
    %281 = vector.broadcast %cst_79 : f32 to vector<16x128xf32>
    %282 = arith.addf %281, %280 : vector<16x128xf32>
    %283 = arith.divf %281, %282 : vector<16x128xf32>
    %c0_80 = arith.constant 0 : index
    %c0_81 = arith.constant 0 : index
    %284 = vector.load %arg6[%c0_80, %c0_81] : memref<16x128xf32, #tpu.memory_space<vmem>>, vector<16x128xf32>
    tpu.vector_store %arg6[%c0_80, %c0_81], %283 {strides = array<i32>} : memref<16x128xf32, #tpu.memory_space<vmem>>, vector<16x128xf32>,
    return
  }
}

</mosaic_0001>

<llo_original>
// kernel: tpu_custom_call.1
$region0: #{tpu_custom_call.1}
  #allocation0 [shape = 'u32[]', space=smem, size = 0x4, offset = 0x4, fixed_abs, tag = 'smem constant byte address 0x4 - core index']
  #allocation1 [shape = 'u32[144,128]{1,0:T(1,128)}', space=vmem, size = 0x12000, scoped, tag = 'internal scratch']
  #allocation2 [shape = 'bf16[16,128]{1,0:T(16,128)(2,1)}', space=vmem, size = 0x1000, scoped, tag = 'scratch operand']
  %s0 = inlined_call_operand.hbm [shape: f32[2,32], index: 0, kind: input, shape index: {}]
  %s1 = inlined_call_operand.hbm [shape: bf16[32,512], index: 1, kind: input, shape index: {}]
  %s2 = inlined_call_operand.hbm [shape: bf16[128,512], index: 2, kind: input, shape index: {}]
  %s3 = inlined_call_operand.vmem [shape: f32[1,512], index: 3, kind: input, shape index: {}]
  %s4 = inlined_call_operand.hbm [shape: bf16[128,128], index: 4, kind: input, shape index: {}]
  %s5 = inlined_call_operand.vmem [shape: f32[1,128], index: 5, kind: input, shape index: {}]
  %s6 = inlined_call_operand.hbm [shape: f32[16,128], index: 6, kind: output, shape index: {}]
  %s7 = sld [smem:[#allocation0]]
  $region50: #{tpu_custom_call.1} parent=0
    _
  %s9 = ssub.s32 1, %s7
  %s10 = scalar_select 0, %s9, %s7
  $region1: #{tpu_custom_call.1} parent=0
    #allocation3 [shape = 'u8[1024]{0}', space=vmem, size = 0x400, scoped, tag = 'input window, operand 0, single buffered']
    #allocation4 [shape = 's32[1]{0}', space=sflag, size = 0x4, scoped, tag = 'scoped memory for tpu_custom_call.1']
    #allocation5 [shape = 's32[1]{0}', space=sflag, size = 0x4, scoped, tag = 'scoped memory for tpu_custom_call.1']
    #allocation6 [shape = 'u8[32768]{0}', space=vmem, size = 0x8000, scoped, tag = 'input window, operand 1, single buffered']
    #allocation7 [shape = 's32[1]{0}', space=sflag, size = 0x4, scoped, tag = 'scoped memory for tpu_custom_call.1']
    #allocation8 [shape = 'u8[131072]{0}', space=vmem, size = 0x20000, scoped, tag = 'input window, operand 2, single buffered']
    #allocation9 [shape = 'u8[32768]{0}', space=vmem, size = 0x8000, scoped, tag = 'input window, operand 4, single buffered']
    #allocation10 [shape = 's32[1]{0}', space=sflag, size = 0x4, scoped, tag = 'scoped memory for tpu_custom_call.1']
    #allocation11 [shape = 'u8[8192]{0}', space=vmem, size = 0x2000, scoped, tag = 'output window, operand 0, single buffered']
    %11 = vsyncpa [#allocation4], 0
    %12 = vsyncpa [#allocation7], 0
    %13 = vsyncpa [#allocation10], 0
    %14 = vsyncpa [#allocation5], 0
    // Predicated region
    $region2: #{tpu_custom_call.1} parent=1 // pred_check
      _
    $region3: #{tpu_custom_call.1} parent=1 // pred_check_branch
      %16 = sbr.rel (0) target = $region5
    $region4: #{tpu_custom_call.1} parent=1 // pred_region
      %s18 = ssub.s32 32, 32
      %19 = vsyncadd [#allocation4], %s18
      %s21 = sshll.u32 [#allocation3], 4
      %s22 = int_to_ptr.vmem [resolvable:$true] %s21
      %24 = dma.hbm_to_vmem [thread:$0]  %s0, 32, %s22, [#allocation4]
    $region5: #{tpu_custom_call.1} parent=1 // pred_fallthru
      _
    // Predicated region
    $region6: #{tpu_custom_call.1} parent=1 // pred_check
      _
    $region7: #{tpu_custom_call.1} parent=1 // pred_check_branch
      %26 = sbr.rel (0) target = $region9
    $region8: #{tpu_custom_call.1} parent=1 // pred_region
      %s28 = ssub.s32 1024, 1024
      %29 = vsyncadd [#allocation7], %s28
      %s30 = sshll.u32 [#allocation6], 4
      %s31 = int_to_ptr.vmem [resolvable:$true] %s30
      %36 = dma.hbm_to_vmem [thread:$0]  %s1, 1024, %s31, [#allocation7], 256, 256, 16
    $region9: #{tpu_custom_call.1} parent=1 // pred_fallthru
      _
    // Predicated region
    $region10: #{tpu_custom_call.1} parent=1 // pred_check
      _
    $region11: #{tpu_custom_call.1} parent=1 // pred_check_branch
      %38 = sbr.rel (0) target = $region13
    $region12: #{tpu_custom_call.1} parent=1 // pred_region
      %s40 = ssub.s32 4096, 4096
      %41 = vsyncadd [#allocation7], %s40
      %s42 = sshll.u32 [#allocation8], 4
      %s43 = int_to_ptr.vmem [resolvable:$true] %s42
      %48 = dma.hbm_to_vmem [thread:$0]  %s2, 4096, %s43, [#allocation7], 256, 256, 16
    $region13: #{tpu_custom_call.1} parent=1 // pred_fallthru
      _
    // Predicated region
    $region14: #{tpu_custom_call.1} parent=1 // pred_check
      _
    $region15: #{tpu_custom_call.1} parent=1 // pred_check_branch
      %50 = sbr.rel (0) target = $region17
    $region16: #{tpu_custom_call.1} parent=1 // pred_region
      _
    $region17: #{tpu_custom_call.1} parent=1 // pred_fallthru
      _
    // Predicated region
    $region18: #{tpu_custom_call.1} parent=1 // pred_check
      _
    $region19: #{tpu_custom_call.1} parent=1 // pred_check_branch
      %52 = sbr.rel (0) target = $region21
    $region20: #{tpu_custom_call.1} parent=1 // pred_region
      %s54 = ssub.s32 1024, 1024
      %55 = vsyncadd [#allocation10], %s54
      %s56 = sshll.u32 [#allocation9], 4
      %s57 = int_to_ptr.vmem [resolvable:$true] %s56
      %62 = dma.hbm_to_vmem [thread:$0]  %s4, 1024, %s57, [#allocation10], 64, 64, 4
    $region21: #{tpu_custom_call.1} parent=1 // pred_fallthru
      _
    // Predicated region
    $region22: #{tpu_custom_call.1} parent=1 // pred_check
      _
    $region23: #{tpu_custom_call.1} parent=1 // pred_check_branch
      %64 = sbr.rel (0) target = $region25
    $region24: #{tpu_custom_call.1} parent=1 // pred_region
      _
    $region25: #{tpu_custom_call.1} parent=1 // pred_fallthru
      _
    // Predicated region
    $region26: #{tpu_custom_call.1} parent=1 // pred_check
      _
    $region27: #{tpu_custom_call.1} parent=1 // pred_check_branch
      %66 = sbr.rel (0) target = $region29
    $region28: #{tpu_custom_call.1} parent=1 // pred_region
      %67 = dma.done [#allocation4], 32
    $region29: #{tpu_custom_call.1} parent=1 // pred_fallthru
      _
    // Predicated region
    $region30: #{tpu_custom_call.1} parent=1 // pred_check
      _
    $region31: #{tpu_custom_call.1} parent=1 // pred_check_branch
      %69 = sbr.rel (0) target = $region33
    $region32: #{tpu_custom_call.1} parent=1 // pred_region
      %70 = dma.done [#allocation7], 1024
    $region33: #{tpu_custom_call.1} parent=1 // pred_fallthru
      _
    // Predicated region
    $region34: #{tpu_custom_call.1} parent=1 // pred_check
      _
    $region35: #{tpu_custom_call.1} parent=1 // pred_check_branch
      %72 = sbr.rel (0) target = $region37
    $region36: #{tpu_custom_call.1} parent=1 // pred_region
      %73 = dma.done [#allocation7], 4096
    $region37: #{tpu_custom_call.1} parent=1 // pred_fallthru
      _
    // Predicated region
    $region38: #{tpu_custom_call.1} parent=1 // pred_check
      _
    $region39: #{tpu_custom_call.1} parent=1 // pred_check_branch
      %75 = sbr.rel (0) target = $region41
    $region40: #{tpu_custom_call.1} parent=1 // pred_region
      %76 = dma.done [#allocation10], 1024
    $region41: #{tpu_custom_call.1} parent=1 // pred_fallthru
      _
    %v78 = vld [vmem:[#allocation3] sm:$0x3]
    %v79 = vpack.c.bf16 %v78, %v78
    %v80 = vld [vmem:[#allocation6] sm:$0xff]
    %v81 = vld [vmem:[#allocation6 + $0x8] sm:$0xff]
    %v82 = vld [vmem:[#allocation6 + $0x10] sm:$0xff]
    %v83 = vld [vmem:[#allocation6 + $0x18] sm:$0xff]
    %v84 = vld [vmem:[#allocation6 + $0x20] sm:$0xff]
    %v85 = vld [vmem:[#allocation6 + $0x28] sm:$0xff]
    %v86 = vld [vmem:[#allocation6 + $0x30] sm:$0xff]
    %v87 = vld [vmem:[#allocation6 + $0x38] sm:$0xff]
    %v88 = vld [vmem:[%s3] sm:$0xf]
    %v90 = vlaneseq
    %v91 = vshrl.u32 %v90, 7
    %v92 = vsub.s32 0, %v91
    %v93 = vrot.slane %v88, %v92
    %v94 = vlaneseq
    %v95 = vshrl.u32 %v94, 7
    %v96 = vsub.s32 1, %v95
    %v97 = vrot.slane %v88, %v96
    %v98 = vlaneseq
    %v99 = vshrl.u32 %v98, 7
    %v100 = vsub.s32 2, %v99
    %v101 = vrot.slane %v88, %v100
    %v102 = vlaneseq
    %v103 = vshrl.u32 %v102, 7
    %v104 = vsub.s32 3, %v103
    %v105 = vrot.slane %v88, %v104
    %v118 = vunpack.c.l.b16 %v80
    %v119 = vunpack.c.h.b16 %v80
    %v120 = vunpack.c.l.b16 %v81
    %v121 = vunpack.c.h.b16 %v81
    %v122 = vunpack.c.l.b16 %v82
    %v123 = vunpack.c.h.b16 %v82
    %v124 = vunpack.c.l.b16 %v83
    %v125 = vunpack.c.h.b16 %v83
    %v126 = vunpack.c.l.b16 %v84
    %v127 = vunpack.c.h.b16 %v84
    %v128 = vunpack.c.l.b16 %v85
    %v129 = vunpack.c.h.b16 %v85
    %v130 = vunpack.c.l.b16 %v86
    %v131 = vunpack.c.h.b16 %v86
    %v132 = vunpack.c.l.b16 %v87
    %v133 = vunpack.c.h.b16 %v87
    %v134 = vpack.c.b16 %v122, %v118
    %v135 = vpack.c.b16 %v123, %v119
    %v136 = vpack.c.b16 %v124, %v120
    %v137 = vpack.c.b16 %v125, %v121
    %v138 = vpack.c.b16 %v130, %v126
    %v139 = vpack.c.b16 %v131, %v127
    %v140 = vpack.c.b16 %v132, %v128
    %v141 = vpack.c.b16 %v133, %v129
    %vm150 = vcmask 261120
    %v152 = vsel %vm150, %v79, 0
    %154 = vmatprep.subr.bf16.mxu0 %v135
    %155 = vmatpush1.bf16.msra.mxu0 %v134
    %156 = vmatprep.subr.bf16.mxu0 %v139
    %157 = vmatpush1.bf16.msra.mxu0 %v138
    %158 = vmatprep.subr.bf16.mxu0 0
    %159 = vmatpush1.bf16.msra.mxu0 0
    %160 = vmatprep.subr.bf16.mxu0 0
    %161 = vmatpush1.bf16.msra.mxu0 0
    %162 = vmatprep.subr.bf16.mxu0 0
    %163 = vmatpush1.bf16.msra.mxu0 0
    %164 = vmatprep.subr.bf16.mxu0 0
    %165 = vmatpush1.bf16.msra.mxu0 0
    %166 = vmatprep.subr.bf16.mxu0 0
    %167 = vmatpush1.bf16.msra.mxu0 0
    %168 = vmatprep.subr.bf16.mxu0 0
    %169 = vmatpush1.bf16.msra.mxu0 0
    %170 = vmatprep.subr.bf16.mxu0 0
    %171 = vmatpush1.bf16.msra.mxu0 0
    %172 = vmatprep.subr.bf16.mxu0 0
    %173 = vmatpush1.bf16.msra.mxu0 0
    %174 = vmatprep.subr.bf16.mxu0 0
    %175 = vmatpush1.bf16.msra.mxu0 0
    %176 = vmatprep.subr.bf16.mxu0 0
    %177 = vmatpush1.bf16.msra.mxu0 0
    %178 = vmatprep.subr.bf16.mxu0 0
    %179 = vmatpush1.bf16.msra.mxu0 0
    %180 = vmatprep.subr.bf16.mxu0 0
    %181 = vmatpush1.bf16.msra.mxu0 0
    %182 = vmatprep.subr.bf16.mxu0 0
    %183 = vmatpush1.bf16.msra.mxu0 0
    %184 = vmatprep.subr.bf16.mxu0 0
    %185 = vmatpush1.bf16.msra.mxu0 0
    %186 = vmatprep.mubr.bf16.mxu0 0
    %187 = vmatmul.mubr.bf16.gmra.mrb[0].mxu0 %v152
    %v188 = vpop.f32.mrb[0].mxu0
    %v189 = vadd.f32 %v93, %v188
    %v190 = vpop.f32.mrb[0].mxu0
    %v191 = vadd.f32 %v97, %v190
    %v192 = vpop.f32.mrb[0].mxu0
    %v193 = vpop.f32.mrb[0].mxu0
    %194 = vdwg.mxu0
    %195 = vmatprep.subr.bf16.mxu0 %v137
    %196 = vmatpush1.bf16.msra.mxu0 %v136
    %197 = vmatprep.subr.bf16.mxu0 %v141
    %198 = vmatpush1.bf16.msra.mxu0 %v140
    %199 = vmatprep.subr.bf16.mxu0 0
    %200 = vmatpush1.bf16.msra.mxu0 0
    %201 = vmatprep.subr.bf16.mxu0 0
    %202 = vmatpush1.bf16.msra.mxu0 0
    %203 = vmatprep.subr.bf16.mxu0 0
    %204 = vmatpush1.bf16.msra.mxu0 0
    %205 = vmatprep.subr.bf16.mxu0 0
    %206 = vmatpush1.bf16.msra.mxu0 0
    %207 = vmatprep.subr.bf16.mxu0 0
    %208 = vmatpush1.bf16.msra.mxu0 0
    %209 = vmatprep.subr.bf16.mxu0 0
    %210 = vmatpush1.bf16.msra.mxu0 0
    %211 = vmatprep.subr.bf16.mxu0 0
    %212 = vmatpush1.bf16.msra.mxu0 0
    %213 = vmatprep.subr.bf16.mxu0 0
    %214 = vmatpush1.bf16.msra.mxu0 0
    %215 = vmatprep.subr.bf16.mxu0 0
    %216 = vmatpush1.bf16.msra.mxu0 0
    %217 = vmatprep.subr.bf16.mxu0 0
    %218 = vmatpush1.bf16.msra.mxu0 0
    %219 = vmatprep.subr.bf16.mxu0 0
    %220 = vmatpush1.bf16.msra.mxu0 0
    %221 = vmatprep.subr.bf16.mxu0 0
    %222 = vmatpush1.bf16.msra.mxu0 0
    %223 = vmatprep.subr.bf16.mxu0 0
    %224 = vmatpush1.bf16.msra.mxu0 0
    %225 = vmatprep.subr.bf16.mxu0 0
    %226 = vmatpush1.bf16.msra.mxu0 0
    %227 = vmatprep.mubr.bf16.mxu0 0
    %228 = vmatmul.mubr.bf16.gmra.mrb[0].mxu0 %v152
    %v229 = vpop.f32.mrb[0].mxu0
    %v230 = vadd.f32 %v101, %v229
    %v231 = vpop.f32.mrb[0].mxu0
    %v232 = vadd.f32 %v105, %v231
    %v233 = vpop.f32.mrb[0].mxu0
    %v234 = vpop.f32.mrb[0].mxu0
    %235 = vdwg.mxu0
    %v236 = vld [vmem:[#allocation8] sm:$0xff]
    %v237 = vld [vmem:[#allocation8 + $0x8] sm:$0xff]
    %v238 = vld [vmem:[#allocation8 + $0x10] sm:$0xff]
    %v239 = vld [vmem:[#allocation8 + $0x18] sm:$0xff]
    %v240 = vld [vmem:[#allocation8 + $0x20] sm:$0xff]
    %v241 = vld [vmem:[#allocation8 + $0x28] sm:$0xff]
    %v242 = vld [vmem:[#allocation8 + $0x30] sm:$0xff]
    %v243 = vld [vmem:[#allocation8 + $0x38] sm:$0xff]
    %v244 = vld [vmem:[#allocation8 + $0x40] sm:$0xff]
    %v245 = vld [vmem:[#allocation8 + $0x48] sm:$0xff]
    %v246 = vld [vmem:[#allocation8 + $0x50] sm:$0xff]
    %v247 = vld [vmem:[#allocation8 + $0x58] sm:$0xff]
    %v248 = vld [vmem:[#allocation8 + $0x60] sm:$0xff]
    %v249 = vld [vmem:[#allocation8 + $0x68] sm:$0xff]
    %v250 = vld [vmem:[#allocation8 + $0x70] sm:$0xff]
    %v251 = vld [vmem:[#allocation8 + $0x78] sm:$0xff]
    %v252 = vld [vmem:[#allocation8 + $0x80] sm:$0xff]
    %v253 = vld [vmem:[#allocation8 + $0x88] sm:$0xff]
    %v254 = vld [vmem:[#allocation8 + $0x90] sm:$0xff]
    %v255 = vld [vmem:[#allocation8 + $0x98] sm:$0xff]
    %v256 = vld [vmem:[#allocation8 + $0xa0] sm:$0xff]
    %v257 = vld [vmem:[#allocation8 + $0xa8] sm:$0xff]
    %v258 = vld [vmem:[#allocation8 + $0xb0] sm:$0xff]
    %v259 = vld [vmem:[#allocation8 + $0xb8] sm:$0xff]
    %v260 = vld [vmem:[#allocation8 + $0xc0] sm:$0xff]
    %v261 = vld [vmem:[#allocation8 + $0xc8] sm:$0xff]
    %v262 = vld [vmem:[#allocation8 + $0xd0] sm:$0xff]
    %v263 = vld [vmem:[#allocation8 + $0xd8] sm:$0xff]
    %v264 = vld [vmem:[#allocation8 + $0xe0] sm:$0xff]
    %v265 = vld [vmem:[#allocation8 + $0xe8] sm:$0xff]
    %v266 = vld [vmem:[#allocation8 + $0xf0] sm:$0xff]
    %v267 = vld [vmem:[#allocation8 + $0xf8] sm:$0xff]
    %v300 = vunpack.c.l.b16 %v236
    %v301 = vunpack.c.h.b16 %v236
    %v302 = vunpack.c.l.b16 %v237
    %v303 = vunpack.c.h.b16 %v237
    %v304 = vunpack.c.l.b16 %v238
    %v305 = vunpack.c.h.b16 %v238
    %v306 = vunpack.c.l.b16 %v239
    %v307 = vunpack.c.h.b16 %v239
    %v308 = vunpack.c.l.b16 %v240
    %v309 = vunpack.c.h.b16 %v240
    %v310 = vunpack.c.l.b16 %v241
    %v311 = vunpack.c.h.b16 %v241
    %v312 = vunpack.c.l.b16 %v242
    %v313 = vunpack.c.h.b16 %v242
    %v314 = vunpack.c.l.b16 %v243
    %v315 = vunpack.c.h.b16 %v243
    %v316 = vunpack.c.l.b16 %v244
    %v317 = vunpack.c.h.b16 %v244
    %v318 = vunpack.c.l.b16 %v245
    %v319 = vunpack.c.h.b16 %v245
    %v320 = vunpack.c.l.b16 %v246
    %v321 = vunpack.c.h.b16 %v246
    %v322 = vunpack.c.l.b16 %v247
    %v323 = vunpack.c.h.b16 %v247
    %v324 = vunpack.c.l.b16 %v248
    %v325 = vunpack.c.h.b16 %v248
    %v326 = vunpack.c.l.b16 %v249
    %v327 = vunpack.c.h.b16 %v249
    %v328 = vunpack.c.l.b16 %v250
    %v329 = vunpack.c.h.b16 %v250
    %v330 = vunpack.c.l.b16 %v251
    %v331 = vunpack.c.h.b16 %v251
    %v332 = vunpack.c.l.b16 %v252
    %v333 = vunpack.c.h.b16 %v252
    %v334 = vunpack.c.l.b16 %v253
    %v335 = vunpack.c.h.b16 %v253
    %v336 = vunpack.c.l.b16 %v254
    %v337 = vunpack.c.h.b16 %v254
    %v338 = vunpack.c.l.b16 %v255
    %v339 = vunpack.c.h.b16 %v255
    %v340 = vunpack.c.l.b16 %v256
    %v341 = vunpack.c.h.b16 %v256
    %v342 = vunpack.c.l.b16 %v257
    %v343 = vunpack.c.h.b16 %v257
    %v344 = vunpack.c.l.b16 %v258
    %v345 = vunpack.c.h.b16 %v258
    %v346 = vunpack.c.l.b16 %v259
    %v347 = vunpack.c.h.b16 %v259
    %v348 = vunpack.c.l.b16 %v260
    %v349 = vunpack.c.h.b16 %v260
    %v350 = vunpack.c.l.b16 %v261
    %v351 = vunpack.c.h.b16 %v261
    %v352 = vunpack.c.l.b16 %v262
    %v353 = vunpack.c.h.b16 %v262
    %v354 = vunpack.c.l.b16 %v263
    %v355 = vunpack.c.h.b16 %v263
    %v356 = vunpack.c.l.b16 %v264
    %v357 = vunpack.c.h.b16 %v264
    %v358 = vunpack.c.l.b16 %v265
    %v359 = vunpack.c.h.b16 %v265
    %v360 = vunpack.c.l.b16 %v266
    %v361 = vunpack.c.h.b16 %v266
    %v362 = vunpack.c.l.b16 %v267
    %v363 = vunpack.c.h.b16 %v267
    %v364 = vpack.c.b16 %v304, %v300
    %v365 = vpack.c.b16 %v305, %v301
    %v366 = vpack.c.b16 %v306, %v302
    %v367 = vpack.c.b16 %v307, %v303
    %v368 = vpack.c.b16 %v312, %v308
    %v369 = vpack.c.b16 %v313, %v309
    %v370 = vpack.c.b16 %v314, %v310
    %v371 = vpack.c.b16 %v315, %v311
    %v372 = vpack.c.b16 %v320, %v316
    %v373 = vpack.c.b16 %v321, %v317
    %v374 = vpack.c.b16 %v322, %v318
    %v375 = vpack.c.b16 %v323, %v319
    %v376 = vpack.c.b16 %v328, %v324
    %v377 = vpack.c.b16 %v329, %v325
    %v378 = vpack.c.b16 %v330, %v326
    %v379 = vpack.c.b16 %v331, %v327
    %v380 = vpack.c.b16 %v336, %v332
    %v381 = vpack.c.b16 %v337, %v333
    %v382 = vpack.c.b16 %v338, %v334
    %v383 = vpack.c.b16 %v339, %v335
    %v384 = vpack.c.b16 %v344, %v340
    %v385 = vpack.c.b16 %v345, %v341
    %v386 = vpack.c.b16 %v346, %v342
    %v387 = vpack.c.b16 %v347, %v343
    %v388 = vpack.c.b16 %v352, %v348
    %v389 = vpack.c.b16 %v353, %v349
    %v390 = vpack.c.b16 %v354, %v350
    %v391 = vpack.c.b16 %v355, %v351
    %v392 = vpack.c.b16 %v360, %v356
    %v393 = vpack.c.b16 %v361, %v357
    %v394 = vpack.c.b16 %v362, %v358
    %v395 = vpack.c.b16 %v363, %v359
    %428 = vmatprep.subr.bf16.mxu0 %v365
    %429 = vmatpush1.bf16.msra.mxu0 %v364
    %430 = vmatprep.subr.bf16.mxu0 %v369
    %431 = vmatpush1.bf16.msra.mxu0 %v368
    %432 = vmatprep.subr.bf16.mxu0 %v373
    %433 = vmatpush1.bf16.msra.mxu0 %v372
    %434 = vmatprep.subr.bf16.mxu0 %v377
    %435 = vmatpush1.bf16.msra.mxu0 %v376
    %436 = vmatprep.subr.bf16.mxu0 %v381
    %437 = vmatpush1.bf16.msra.mxu0 %v380
    %438 = vmatprep.subr.bf16.mxu0 %v385
    %439 = vmatpush1.bf16.msra.mxu0 %v384
    %440 = vmatprep.subr.bf16.mxu0 %v389
    %441 = vmatpush1.bf16.msra.mxu0 %v388
    %442 = vmatprep.subr.bf16.mxu0 %v393
    %443 = vmatpush1.bf16.msra.mxu0 %v392
    %444 = vmatprep.subr.bf16.mxu0 0
    %445 = vmatpush1.bf16.msra.mxu0 0
    %446 = vmatprep.subr.bf16.mxu0 0
    %447 = vmatpush1.bf16.msra.mxu0 0
    %448 = vmatprep.subr.bf16.mxu0 0
    %449 = vmatpush1.bf16.msra.mxu0 0
    %450 = vmatprep.subr.bf16.mxu0 0
    %451 = vmatpush1.bf16.msra.mxu0 0
    %452 = vmatprep.subr.bf16.mxu0 0
    %453 = vmatpush1.bf16.msra.mxu0 0
    %454 = vmatprep.subr.bf16.mxu0 0
    %455 = vmatpush1.bf16.msra.mxu0 0
    %456 = vmatprep.subr.bf16.mxu0 0
    %457 = vmatpush1.bf16.msra.mxu0 0
    %458 = vmatprep.subr.bf16.mxu0 0
    %459 = vmatpush1.bf16.msra.mxu0 0
    %460 = vmatprep.mubr.bf16.mxu0 0
    %461 = vmatmul.mubr.bf16.gmra.mrb[0].mxu0 0
    %v462 = vpop.f32.mrb[0].mxu0
    %v463 = vadd.f32 0.0, %v462
    %v464 = vpop.f32.mrb[0].mxu0
    %v465 = vadd.f32 0.0, %v464
    %v466 = vpop.f32.mrb[0].mxu0
    %v467 = vpop.f32.mrb[0].mxu0
    %468 = vdwg.mxu0
    %469 = vmatprep.subr.bf16.mxu0 %v367
    %470 = vmatpush1.bf16.msra.mxu0 %v366
    %471 = vmatprep.subr.bf16.mxu0 %v371
    %472 = vmatpush1.bf16.msra.mxu0 %v370
    %473 = vmatprep.subr.bf16.mxu0 %v375
    %474 = vmatpush1.bf16.msra.mxu0 %v374
    %475 = vmatprep.subr.bf16.mxu0 %v379
    %476 = vmatpush1.bf16.msra.mxu0 %v378
    %477 = vmatprep.subr.bf16.mxu0 %v383
    %478 = vmatpush1.bf16.msra.mxu0 %v382
    %479 = vmatprep.subr.bf16.mxu0 %v387
    %480 = vmatpush1.bf16.msra.mxu0 %v386
    %481 = vmatprep.subr.bf16.mxu0 %v391
    %482 = vmatpush1.bf16.msra.mxu0 %v390
    %483 = vmatprep.subr.bf16.mxu0 %v395
    %484 = vmatpush1.bf16.msra.mxu0 %v394
    %485 = vmatprep.subr.bf16.mxu0 0
    %486 = vmatpush1.bf16.msra.mxu0 0
    %487 = vmatprep.subr.bf16.mxu0 0
    %488 = vmatpush1.bf16.msra.mxu0 0
    %489 = vmatprep.subr.bf16.mxu0 0
    %490 = vmatpush1.bf16.msra.mxu0 0
    %491 = vmatprep.subr.bf16.mxu0 0
    %492 = vmatpush1.bf16.msra.mxu0 0
    %493 = vmatprep.subr.bf16.mxu0 0
    %494 = vmatpush1.bf16.msra.mxu0 0
    %495 = vmatprep.subr.bf16.mxu0 0
    %496 = vmatpush1.bf16.msra.mxu0 0
    %497 = vmatprep.subr.bf16.mxu0 0
    %498 = vmatpush1.bf16.msra.mxu0 0
    %499 = vmatprep.subr.bf16.mxu0 0
    %500 = vmatpush1.bf16.msra.mxu0 0
    %501 = vmatprep.mubr.bf16.mxu0 0
    %502 = vmatmul.mubr.bf16.gmra.mrb[0].mxu0 0
    %v503 = vpop.f32.mrb[0].mxu0
    %v504 = vadd.f32 0.0, %v503
    %v505 = vpop.f32.mrb[0].mxu0
    %v506 = vadd.f32 0.0, %v505
    %v507 = vpop.f32.mrb[0].mxu0
    %v508 = vpop.f32.mrb[0].mxu0
    %509 = vdwg.mxu0
    %v510 = vadd.f32 %v189, %v463
    %v511 = vadd.f32 %v191, %v465
    %v512 = vadd.f32 %v230, %v504
    %v513 = vadd.f32 %v232, %v506
    %v514 = vxor.u32 %v510, 2147483648
    %v515 = vmul.f32 %v514, 1.442695
    %v516 = vpow.pop %v515
    %v517 = vadd.f32 %v516, 1.0
    %v518 = vrcp.pop %v517
    %v519 = vmul.f32 1.0, %v518
    %v520 = vxor.u32 %v511, 2147483648
    %v521 = vmul.f32 %v520, 1.442695
    %v522 = vpow.pop %v521
    %v523 = vadd.f32 %v522, 1.0
    %v524 = vrcp.pop %v523
    %v525 = vmul.f32 1.0, %v524
    %v526 = vtanh.pop %v512
    %v527 = vxor.u32 %v513, 2147483648
    %v528 = vmul.f32 %v527, 1.442695
    %v529 = vpow.pop %v528
    %v530 = vadd.f32 %v529, 1.0
    %v531 = vrcp.pop %v530
    %v532 = vmul.f32 1.0, %v531
    %v533 = vmul.f32 %v525, 0.0
    %v534 = vmul.f32 %v519, %v526
    %v535 = vadd.f32 %v533, %v534
    %v536 = vtanh.pop %v535
    %v537 = vmul.f32 %v532, %v536
    %v538 = vpack.c.bf16 %v537, %v537
    %vm539 = vcmask 1040384
    %vm540 = vsmask.f32 256
    %vm541 = vmand %vm539, %vm540
    %v542 = vld [vmem:[#allocation2] sm:$0x1]
    %v543 = vsel %vm541, %v538, %v542
    %544 = vst [vmem:[#allocation2] sm:$0x1] %v543
    %v546 = vshrl.u32 %v538, 16
    %v548 = vrot.slane %v546, 4
    %vm550 = vcmask 1044484
    %vm551 = vsmask.f32 4352
    %vm552 = vmand %vm550, %vm551
    %v553 = vld [vmem:[#allocation2] sm:$0x10]
    %v554 = vsel %vm552, %v548, %v553
    %555 = vst [vmem:[#allocation2] sm:$0x10] %v554
    %v556 = vld [vmem:[#allocation8] sm:$0xff]
    %v557 = vld [vmem:[#allocation8 + $0x8] sm:$0xff]
    %v558 = vld [vmem:[#allocation8 + $0x10] sm:$0xff]
    %v559 = vld [vmem:[#allocation8 + $0x18] sm:$0xff]
    %v560 = vld [vmem:[#allocation8 + $0x20] sm:$0xff]
    %v561 = vld [vmem:[#allocation8 + $0x28] sm:$0xff]
    %v562 = vld [vmem:[#allocation8 + $0x30] sm:$0xff]
    %v563 = vld [vmem:[#allocation8 + $0x38] sm:$0xff]
    %v564 = vld [vmem:[#allocation8 + $0x40] sm:$0xff]
    %v565 = vld [vmem:[#allocation8 + $0x48] sm:$0xff]
    %v566 = vld [vmem:[#allocation8 + $0x50] sm:$0xff]
    %v567 = vld [vmem:[#allocation8 + $0x58] sm:$0xff]
    %v568 = vld [vmem:[#allocation8 + $0x60] sm:$0xff]
    %v569 = vld [vmem:[#allocation8 + $0x68] sm:$0xff]
    %v570 = vld [vmem:[#allocation8 + $0x70] sm:$0xff]
    %v571 = vld [vmem:[#allocation8 + $0x78] sm:$0xff]
    %v572 = vld [vmem:[#allocation8 + $0x80] sm:$0xff]
    %v573 = vld [vmem:[#allocation8 + $0x88] sm:$0xff]
    %v574 = vld [vmem:[#allocation8 + $0x90] sm:$0xff]
    %v575 = vld [vmem:[#allocation8 + $0x98] sm:$0xff]
    %v576 = vld [vmem:[#allocation8 + $0xa0] sm:$0xff]
    %v577 = vld [vmem:[#allocation8 + $0xa8] sm:$0xff]
    %v578 = vld [vmem:[#allocation8 + $0xb0] sm:$0xff]
    %v579 = vld [vmem:[#allocation8 + $0xb8] sm:$0xff]
    %v580 = vld [vmem:[#allocation8 + $0xc0] sm:$0xff]
    %v581 = vld [vmem:[#allocation8 + $0xc8] sm:$0xff]
    %v582 = vld [vmem:[#allocation8 + $0xd0] sm:$0xff]
    %v583 = vld [vmem:[#allocation8 + $0xd8] sm:$0xff]
    %v584 = vld [vmem:[#allocation8 + $0xe0] sm:$0xff]
    %v585 = vld [vmem:[#allocation8 + $0xe8] sm:$0xff]
    %v586 = vld [vmem:[#allocation8 + $0xf0] sm:$0xff]
    %v587 = vld [vmem:[#allocation8 + $0xf8] sm:$0xff]
    %v620 = vunpack.c.l.b16 %v556
    %v621 = vunpack.c.h.b16 %v556
    %v622 = vunpack.c.l.b16 %v557
    %v623 = vunpack.c.h.b16 %v557
    %v624 = vunpack.c.l.b16 %v558
    %v625 = vunpack.c.h.b16 %v558
    %v626 = vunpack.c.l.b16 %v559
    %v627 = vunpack.c.h.b16 %v559
    %v628 = vunpack.c.l.b16 %v560
    %v629 = vunpack.c.h.b16 %v560
    %v630 = vunpack.c.l.b16 %v561
    %v631 = vunpack.c.h.b16 %v561
    %v632 = vunpack.c.l.b16 %v562
    %v633 = vunpack.c.h.b16 %v562
    %v634 = vunpack.c.l.b16 %v563
    %v635 = vunpack.c.h.b16 %v563
    %v636 = vunpack.c.l.b16 %v564
    %v637 = vunpack.c.h.b16 %v564
    %v638 = vunpack.c.l.b16 %v565
    %v639 = vunpack.c.h.b16 %v565
    %v640 = vunpack.c.l.b16 %v566
    %v641 = vunpack.c.h.b16 %v566
    %v642 = vunpack.c.l.b16 %v567
    %v643 = vunpack.c.h.b16 %v567
    %v644 = vunpack.c.l.b16 %v568
    %v645 = vunpack.c.h.b16 %v568
    %v646 = vunpack.c.l.b16 %v569
    %v647 = vunpack.c.h.b16 %v569
    %v648 = vunpack.c.l.b16 %v570
    %v649 = vunpack.c.h.b16 %v570
    %v650 = vunpack.c.l.b16 %v571
    %v651 = vunpack.c.h.b16 %v571
    %v652 = vunpack.c.l.b16 %v572
    %v653 = vunpack.c.h.b16 %v572
    %v654 = vunpack.c.l.b16 %v573
    %v655 = vunpack.c.h.b16 %v573
    %v656 = vunpack.c.l.b16 %v574
    %v657 = vunpack.c.h.b16 %v574
    %v658 = vunpack.c.l.b16 %v575
    %v659 = vunpack.c.h.b16 %v575
    %v660 = vunpack.c.l.b16 %v576
    %v661 = vunpack.c.h.b16 %v576
    %v662 = vunpack.c.l.b16 %v577
    %v663 = vunpack.c.h.b16 %v577
    %v664 = vunpack.c.l.b16 %v578
    %v665 = vunpack.c.h.b16 %v578
    %v666 = vunpack.c.l.b16 %v579
    %v667 = vunpack.c.h.b16 %v579
    %v668 = vunpack.c.l.b16 %v580
    %v669 = vunpack.c.h.b16 %v580
    %v670 = vunpack.c.l.b16 %v581
    %v671 = vunpack.c.h.b16 %v581
    %v672 = vunpack.c.l.b16 %v582
    %v673 = vunpack.c.h.b16 %v582
    %v674 = vunpack.c.l.b16 %v583
    %v675 = vunpack.c.h.b16 %v583
    %v676 = vunpack.c.l.b16 %v584
    %v677 = vunpack.c.h.b16 %v584
    %v678 = vunpack.c.l.b16 %v585
    %v679 = vunpack.c.h.b16 %v585
    %v680 = vunpack.c.l.b16 %v586
    %v681 = vunpack.c.h.b16 %v586
    %v682 = vunpack.c.l.b16 %v587
    %v683 = vunpack.c.h.b16 %v587
    %v684 = vpack.c.b16 %v624, %v620
    %v685 = vpack.c.b16 %v625, %v621
    %v686 = vpack.c.b16 %v626, %v622
    %v687 = vpack.c.b16 %v627, %v623
    %v688 = vpack.c.b16 %v632, %v628
    %v689 = vpack.c.b16 %v633, %v629
    %v690 = vpack.c.b16 %v634, %v630
    %v691 = vpack.c.b16 %v635, %v631
    %v692 = vpack.c.b16 %v640, %v636
    %v693 = vpack.c.b16 %v641, %v637
    %v694 = vpack.c.b16 %v642, %v638
    %v695 = vpack.c.b16 %v643, %v639
    %v696 = vpack.c.b16 %v648, %v644
    %v697 = vpack.c.b16 %v649, %v645
    %v698 = vpack.c.b16 %v650, %v646
    %v699 = vpack.c.b16 %v651, %v647
    %v700 = vpack.c.b16 %v656, %v652
    %v701 = vpack.c.b16 %v657, %v653
    %v702 = vpack.c.b16 %v658, %v654
    %v703 = vpack.c.b16 %v659, %v655
    %v704 = vpack.c.b16 %v664, %v660
    %v705 = vpack.c.b16 %v665, %v661
    %v706 = vpack.c.b16 %v666, %v662
    %v707 = vpack.c.b16 %v667, %v663
    %v708 = vpack.c.b16 %v672, %v668
    %v709 = vpack.c.b16 %v673, %v669
    %v710 = vpack.c.b16 %v674, %v670
    %v711 = vpack.c.b16 %v675, %v671
    %v712 = vpack.c.b16 %v680, %v676
    %v713 = vpack.c.b16 %v681, %v677
    %v714 = vpack.c.b16 %v682, %v678
    %v715 = vpack.c.b16 %v683, %v679
    %748 = vmatprep.subr.bf16.mxu0 %v685
    %749 = vmatpush1.bf16.msra.mxu0 %v684
    %750 = vmatprep.subr.bf16.mxu0 %v689
    %751 = vmatpush1.bf16.msra.mxu0 %v688
    %752 = vmatprep.subr.bf16.mxu0 %v693
    %753 = vmatpush1.bf16.msra.mxu0 %v692
    %754 = vmatprep.subr.bf16.mxu0 %v697
    %755 = vmatpush1.bf16.msra.mxu0 %v696
    %756 = vmatprep.subr.bf16.mxu0 %v701
    %757 = vmatpush1.bf16.msra.mxu0 %v700
    %758 = vmatprep.subr.bf16.mxu0 %v705
    %759 = vmatpush1.bf16.msra.mxu0 %v704
    %760 = vmatprep.subr.bf16.mxu0 %v709
    %761 = vmatpush1.bf16.msra.mxu0 %v708
    %762 = vmatprep.subr.bf16.mxu0 %v713
    %763 = vmatpush1.bf16.msra.mxu0 %v712
    %764 = vmatprep.subr.bf16.mxu0 0
    %765 = vmatpush1.bf16.msra.mxu0 0
    %766 = vmatprep.subr.bf16.mxu0 0
    %767 = vmatpush1.bf16.msra.mxu0 0
    %768 = vmatprep.subr.bf16.mxu0 0
    %769 = vmatpush1.bf16.msra.mxu0 0
    %770 = vmatprep.subr.bf16.mxu0 0
    %771 = vmatpush1.bf16.msra.mxu0 0
    %772 = vmatprep.subr.bf16.mxu0 0
    %773 = vmatpush1.bf16.msra.mxu0 0
    %774 = vmatprep.subr.bf16.mxu0 0
    %775 = vmatpush1.bf16.msra.mxu0 0
    %776 = vmatprep.subr.bf16.mxu0 0
    %777 = vmatpush1.bf16.msra.mxu0 0
    %778 = vmatprep.subr.bf16.mxu0 0
    %779 = vmatpush1.bf16.msra.mxu0 0
    %780 = vmatprep.mubr.bf16.mxu0 0
    %781 = vmatmul.mubr.bf16.gmra.mrb[0].mxu0 %v538
    %v782 = vpop.f32.mrb[0].mxu0
    %v783 = vadd.f32 0.0, %v782
    %v784 = vpop.f32.mrb[0].mxu0
    %v785 = vadd.f32 0.0, %v784
    %v786 = vpop.f32.mrb[0].mxu0
    %v787 = vpop.f32.mrb[0].mxu0
    %788 = vdwg.mxu0
    %789 = vmatprep.subr.bf16.mxu0 %v687
    %790 = vmatpush1.bf16.msra.mxu0 %v686
    %791 = vmatprep.subr.bf16.mxu0 %v691
    %792 = vmatpush1.bf16.msra.mxu0 %v690
    %793 = vmatprep.subr.bf16.mxu0 %v695
    %794 = vmatpush1.bf16.msra.mxu0 %v694
    %795 = vmatprep.subr.bf16.mxu0 %v699
    %796 = vmatpush1.bf16.msra.mxu0 %v698
    %797 = vmatprep.subr.bf16.mxu0 %v703
    %798 = vmatpush1.bf16.msra.mxu0 %v702
    %799 = vmatprep.subr.bf16.mxu0 %v707
    %800 = vmatpush1.bf16.msra.mxu0 %v706
    %801 = vmatprep.subr.bf16.mxu0 %v711
    %802 = vmatpush1.bf16.msra.mxu0 %v710
    %803 = vmatprep.subr.bf16.mxu0 %v715
    %804 = vmatpush1.bf16.msra.mxu0 %v714
    %805 = vmatprep.subr.bf16.mxu0 0
    %806 = vmatpush1.bf16.msra.mxu0 0
    %807 = vmatprep.subr.bf16.mxu0 0
    %808 = vmatpush1.bf16.msra.mxu0 0
    %809 = vmatprep.subr.bf16.mxu0 0
    %810 = vmatpush1.bf16.msra.mxu0 0
    %811 = vmatprep.subr.bf16.mxu0 0
    %812 = vmatpush1.bf16.msra.mxu0 0
    %813 = vmatprep.subr.bf16.mxu0 0
    %814 = vmatpush1.bf16.msra.mxu0 0
    %815 = vmatprep.subr.bf16.mxu0 0
    %816 = vmatpush1.bf16.msra.mxu0 0
    %817 = vmatprep.subr.bf16.mxu0 0
    %818 = vmatpush1.bf16.msra.mxu0 0
    %819 = vmatprep.subr.bf16.mxu0 0
    %820 = vmatpush1.bf16.msra.mxu0 0
    %821 = vmatprep.mubr.bf16.mxu0 0
    %822 = vmatmul.mubr.bf16.gmra.mrb[0].mxu0 %v538
    %v823 = vpop.f32.mrb[0].mxu0
    %v824 = vadd.f32 0.0, %v823
    %v825 = vpop.f32.mrb[0].mxu0
    %v826 = vadd.f32 0.0, %v825
    %v827 = vpop.f32.mrb[0].mxu0
    %v828 = vpop.f32.mrb[0].mxu0
    %829 = vdwg.mxu0
    %v830 = vadd.f32 %v189, %v783
    %v831 = vadd.f32 %v191, %v785
    %v832 = vadd.f32 %v230, %v824
    %v833 = vadd.f32 %v232, %v826
    %v834 = vxor.u32 %v830, 2147483648
    %v835 = vmul.f32 %v834, 1.442695
    %v836 = vpow.pop %v835
    %v837 = vadd.f32 %v836, 1.0
    %v838 = vrcp.pop %v837
    %v839 = vmul.f32 1.0, %v838
    %v840 = vxor.u32 %v831, 2147483648
    %v841 = vmul.f32 %v840, 1.442695
    %v842 = vpow.pop %v841
    %v843 = vadd.f32 %v842, 1.0
    %v844 = vrcp.pop %v843
    %v845 = vmul.f32 1.0, %v844
    %v846 = vtanh.pop %v832
    %v847 = vxor.u32 %v833, 2147483648
    %v848 = vmul.f32 %v847, 1.442695
    %v849 = vpow.pop %v848
    %v850 = vadd.f32 %v849, 1.0
    %v851 = vrcp.pop %v850
    %v852 = vmul.f32 1.0, %v851
    %v853 = vmul.f32 %v845, %v535
    %v854 = vmul.f32 %v839, %v846
    %v855 = vadd.f32 %v853, %v854
    %v856 = vtanh.pop %v855
    %v857 = vmul.f32 %v852, %v856
    %v858 = vpack.c.bf16 %v857, %v857
    %v860 = vshll.u32 %v858, 16
    %vm863 = vsmask.f32 7938
    %vm864 = vmand %vm539, %vm863
    %v865 = vld [vmem:[#allocation2] sm:$0x1]
    %v866 = vsel %vm864, %v860, %v865
    %867 = vst [vmem:[#allocation2] sm:$0x1] %v866
    %v869 = vrot.slane %v858, 4
    %vm871 = vsmask.f32 7954
    %vm872 = vmand %vm550, %vm871
    %v873 = vld [vmem:[#allocation2] sm:$0x10]
    %v874 = vsel %vm872, %v869, %v873
    %875 = vst [vmem:[#allocation2] sm:$0x10] %v874
    %v876 = vld [vmem:[#allocation8] sm:$0xff]
    %v877 = vld [vmem:[#allocation8 + $0x8] sm:$0xff]
    %v878 = vld [vmem:[#allocation8 + $0x10] sm:$0xff]
    %v879 = vld [vmem:[#allocation8 + $0x18] sm:$0xff]
    %v880 = vld [vmem:[#allocation8 + $0x20] sm:$0xff]
    %v881 = vld [vmem:[#allocation8 + $0x28] sm:$0xff]
    %v882 = vld [vmem:[#allocation8 + $0x30] sm:$0xff]
    %v883 = vld [vmem:[#allocation8 + $0x38] sm:$0xff]
    %v884 = vld [vmem:[#allocation8 + $0x40] sm:$0xff]
    %v885 = vld [vmem:[#allocation8 + $0x48] sm:$0xff]
    %v886 = vld [vmem:[#allocation8 + $0x50] sm:$0xff]
    %v887 = vld [vmem:[#allocation8 + $0x58] sm:$0xff]
    %v888 = vld [vmem:[#allocation8 + $0x60] sm:$0xff]
    %v889 = vld [vmem:[#allocation8 + $0x68] sm:$0xff]
    %v890 = vld [vmem:[#allocation8 + $0x70] sm:$0xff]
    %v891 = vld [vmem:[#allocation8 + $0x78] sm:$0xff]
    %v892 = vld [vmem:[#allocation8 + $0x80] sm:$0xff]
    %v893 = vld [vmem:[#allocation8 + $0x88] sm:$0xff]
    %v894 = vld [vmem:[#allocation8 + $0x90] sm:$0xff]
    %v895 = vld [vmem:[#allocation8 + $0x98] sm:$0xff]
    %v896 = vld [vmem:[#allocation8 + $0xa0] sm:$0xff]
    %v897 = vld [vmem:[#allocation8 + $0xa8] sm:$0xff]
    %v898 = vld [vmem:[#allocation8 + $0xb0] sm:$0xff]
    %v899 = vld [vmem:[#allocation8 + $0xb8] sm:$0xff]
    %v900 = vld [vmem:[#allocation8 + $0xc0] sm:$0xff]
    %v901 = vld [vmem:[#allocation8 + $0xc8] sm:$0xff]
    %v902 = vld [vmem:[#allocation8 + $0xd0] sm:$0xff]
    %v903 = vld [vmem:[#allocation8 + $0xd8] sm:$0xff]
    %v904 = vld [vmem:[#allocation8 + $0xe0] sm:$0xff]
    %v905 = vld [vmem:[#allocation8 + $0xe8] sm:$0xff]
    %v906 = vld [vmem:[#allocation8 + $0xf0] sm:$0xff]
    %v907 = vld [vmem:[#allocation8 + $0xf8] sm:$0xff]
    %v940 = vunpack.c.l.b16 %v876
    %v941 = vunpack.c.h.b16 %v876
    %v942 = vunpack.c.l.b16 %v877
    %v943 = vunpack.c.h.b16 %v877
    %v944 = vunpack.c.l.b16 %v878
    %v945 = vunpack.c.h.b16 %v878
    %v946 = vunpack.c.l.b16 %v879
    %v947 = vunpack.c.h.b16 %v879
    %v948 = vunpack.c.l.b16 %v880
    %v949 = vunpack.c.h.b16 %v880
    %v950 = vunpack.c.l.b16 %v881
    %v951 = vunpack.c.h.b16 %v881
    %v952 = vunpack.c.l.b16 %v882
    %v953 = vunpack.c.h.b16 %v882
    %v954 = vunpack.c.l.b16 %v883
    %v955 = vunpack.c.h.b16 %v883
    %v956 = vunpack.c.l.b16 %v884
    %v957 = vunpack.c.h.b16 %v884
    %v958 = vunpack.c.l.b16 %v885
    %v959 = vunpack.c.h.b16 %v885
    %v960 = vunpack.c.l.b16 %v886
    %v961 = vunpack.c.h.b16 %v886
    %v962 = vunpack.c.l.b16 %v887
    %v963 = vunpack.c.h.b16 %v887
    %v964 = vunpack.c.l.b16 %v888
    %v965 = vunpack.c.h.b16 %v888
    %v966 = vunpack.c.l.b16 %v889
    %v967 = vunpack.c.h.b16 %v889
    %v968 = vunpack.c.l.b16 %v890
    %v969 = vunpack.c.h.b16 %v890
    %v970 = vunpack.c.l.b16 %v891
    %v971 = vunpack.c.h.b16 %v891
    %v972 = vunpack.c.l.b16 %v892
    %v973 = vunpack.c.h.b16 %v892
    %v974 = vunpack.c.l.b16 %v893
    %v975 = vunpack.c.h.b16 %v893
    %v976 = vunpack.c.l.b16 %v894
    %v977 = vunpack.c.h.b16 %v894
    %v978 = vunpack.c.l.b16 %v895
    %v979 = vunpack.c.h.b16 %v895
    %v980 = vunpack.c.l.b16 %v896
    %v981 = vunpack.c.h.b16 %v896
    %v982 = vunpack.c.l.b16 %v897
    %v983 = vunpack.c.h.b16 %v897
    %v984 = vunpack.c.l.b16 %v898
    %v985 = vunpack.c.h.b16 %v898
    %v986 = vunpack.c.l.b16 %v899
    %v987 = vunpack.c.h.b16 %v899
    %v988 = vunpack.c.l.b16 %v900
    %v989 = vunpack.c.h.b16 %v900
    %v990 = vunpack.c.l.b16 %v901
    %v991 = vunpack.c.h.b16 %v901
    %v992 = vunpack.c.l.b16 %v902
    %v993 = vunpack.c.h.b16 %v902
    %v994 = vunpack.c.l.b16 %v903
    %v995 = vunpack.c.h.b16 %v903
    %v996 = vunpack.c.l.b16 %v904
    %v997 = vunpack.c.h.b16 %v904
    %v998 = vunpack.c.l.b16 %v905
    %v999 = vunpack.c.h.b16 %v905
    %v1000 = vunpack.c.l.b16 %v906
    %v1001 = vunpack.c.h.b16 %v906
    %v1002 = vunpack.c.l.b16 %v907
    %v1003 = vunpack.c.h.b16 %v907
    %v1004 = vpack.c.b16 %v944, %v940
    %v1005 = vpack.c.b16 %v945, %v941
    %v1006 = vpack.c.b16 %v946, %v942
    %v1007 = vpack.c.b16 %v947, %v943
    %v1008 = vpack.c.b16 %v952, %v948
    %v1009 = vpack.c.b16 %v953, %v949
    %v1010 = vpack.c.b16 %v954, %v950
    %v1011 = vpack.c.b16 %v955, %v951
    %v1012 = vpack.c.b16 %v960, %v956
    %v1013 = vpack.c.b16 %v961, %v957
    %v1014 = vpack.c.b16 %v962, %v958
    %v1015 = vpack.c.b16 %v963, %v959
    %v1016 = vpack.c.b16 %v968, %v964
    %v1017 = vpack.c.b16 %v969, %v965
    %v1018 = vpack.c.b16 %v970, %v966
    %v1019 = vpack.c.b16 %v971, %v967
    %v1020 = vpack.c.b16 %v976, %v972
    %v1021 = vpack.c.b16 %v977, %v973
    %v1022 = vpack.c.b16 %v978, %v974
    %v1023 = vpack.c.b16 %v979, %v975
    %v1024 = vpack.c.b16 %v984, %v980
    %v1025 = vpack.c.b16 %v985, %v981
    %v1026 = vpack.c.b16 %v986, %v982
    %v1027 = vpack.c.b16 %v987, %v983
    %v1028 = vpack.c.b16 %v992, %v988
    %v1029 = vpack.c.b16 %v993, %v989
    %v1030 = vpack.c.b16 %v994, %v990
    %v1031 = vpack.c.b16 %v995, %v991
    %v1032 = vpack.c.b16 %v1000, %v996
    %v1033 = vpack.c.b16 %v1001, %v997
    %v1034 = vpack.c.b16 %v1002, %v998
    %v1035 = vpack.c.b16 %v1003, %v999
    %1068 = vmatprep.subr.bf16.mxu0 %v1005
    %1069 = vmatpush1.bf16.msra.mxu0 %v1004
    %1070 = vmatprep.subr.bf16.mxu0 %v1009
    %1071 = vmatpush1.bf16.msra.mxu0 %v1008
    %1072 = vmatprep.subr.bf16.mxu0 %v1013
    %1073 = vmatpush1.bf16.msra.mxu0 %v1012
    %1074 = vmatprep.subr.bf16.mxu0 %v1017
    %1075 = vmatpush1.bf16.msra.mxu0 %v1016
    %1076 = vmatprep.subr.bf16.mxu0 %v1021
    %1077 = vmatpush1.bf16.msra.mxu0 %v1020
    %1078 = vmatprep.subr.bf16.mxu0 %v1025
    %1079 = vmatpush1.bf16.msra.mxu0 %v1024
    %1080 = vmatprep.subr.bf16.mxu0 %v1029
    %1081 = vmatpush1.bf16.msra.mxu0 %v1028
    %1082 = vmatprep.subr.bf16.mxu0 %v1033
    %1083 = vmatpush1.bf16.msra.mxu0 %v1032
    %1084 = vmatprep.subr.bf16.mxu0 0
    %1085 = vmatpush1.bf16.msra.mxu0 0
    %1086 = vmatprep.subr.bf16.mxu0 0
    %1087 = vmatpush1.bf16.msra.mxu0 0
    %1088 = vmatprep.subr.bf16.mxu0 0
    %1089 = vmatpush1.bf16.msra.mxu0 0
    %1090 = vmatprep.subr.bf16.mxu0 0
    %1091 = vmatpush1.bf16.msra.mxu0 0
    %1092 = vmatprep.subr.bf16.mxu0 0
    %1093 = vmatpush1.bf16.msra.mxu0 0
    %1094 = vmatprep.subr.bf16.mxu0 0
    %1095 = vmatpush1.bf16.msra.mxu0 0
    %1096 = vmatprep.subr.bf16.mxu0 0
    %1097 = vmatpush1.bf16.msra.mxu0 0
    %1098 = vmatprep.subr.bf16.mxu0 0
    %1099 = vmatpush1.bf16.msra.mxu0 0
    %1100 = vmatprep.mubr.bf16.mxu0 0
    %1101 = vmatmul.mubr.bf16.gmra.mrb[0].mxu0 %v858
    %v1102 = vpop.f32.mrb[0].mxu0
    %v1103 = vadd.f32 0.0, %v1102
    %v1104 = vpop.f32.mrb[0].mxu0
    %v1105 = vadd.f32 0.0, %v1104
    %v1106 = vpop.f32.mrb[0].mxu0
    %v1107 = vpop.f32.mrb[0].mxu0
    %1108 = vdwg.mxu0
    %1109 = vmatprep.subr.bf16.mxu0 %v1007
    %1110 = vmatpush1.bf16.msra.mxu0 %v1006
    %1111 = vmatprep.subr.bf16.mxu0 %v1011
    %1112 = vmatpush1.bf16.msra.mxu0 %v1010
    %1113 = vmatprep.subr.bf16.mxu0 %v1015
    %1114 = vmatpush1.bf16.msra.mxu0 %v1014
    %1115 = vmatprep.subr.bf16.mxu0 %v1019
    %1116 = vmatpush1.bf16.msra.mxu0 %v1018
    %1117 = vmatprep.subr.bf16.mxu0 %v1023
    %1118 = vmatpush1.bf16.msra.mxu0 %v1022
    %1119 = vmatprep.subr.bf16.mxu0 %v1027
    %1120 = vmatpush1.bf16.msra.mxu0 %v1026
    %1121 = vmatprep.subr.bf16.mxu0 %v1031
    %1122 = vmatpush1.bf16.msra.mxu0 %v1030
    %1123 = vmatprep.subr.bf16.mxu0 %v1035
    %1124 = vmatpush1.bf16.msra.mxu0 %v1034
    %1125 = vmatprep.subr.bf16.mxu0 0
    %1126 = vmatpush1.bf16.msra.mxu0 0
    %1127 = vmatprep.subr.bf16.mxu0 0
    %1128 = vmatpush1.bf16.msra.mxu0 0
    %1129 = vmatprep.subr.bf16.mxu0 0
    %1130 = vmatpush1.bf16.msra.mxu0 0
    %1131 = vmatprep.subr.bf16.mxu0 0
    %1132 = vmatpush1.bf16.msra.mxu0 0
    %1133 = vmatprep.subr.bf16.mxu0 0
    %1134 = vmatpush1.bf16.msra.mxu0 0
    %1135 = vmatprep.subr.bf16.mxu0 0
    %1136 = vmatpush1.bf16.msra.mxu0 0
    %1137 = vmatprep.subr.bf16.mxu0 0
    %1138 = vmatpush1.bf16.msra.mxu0 0
    %1139 = vmatprep.subr.bf16.mxu0 0
    %1140 = vmatpush1.bf16.msra.mxu0 0
    %1141 = vmatprep.mubr.bf16.mxu0 0
    %1142 = vmatmul.mubr.bf16.gmra.mrb[0].mxu0 %v858
    %v1143 = vpop.f32.mrb[0].mxu0
    %v1144 = vadd.f32 0.0, %v1143
    %v1145 = vpop.f32.mrb[0].mxu0
    %v1146 = vadd.f32 0.0, %v1145
    %v1147 = vpop.f32.mrb[0].mxu0
    %v1148 = vpop.f32.mrb[0].mxu0
    %1149 = vdwg.mxu0
    %v1150 = vadd.f32 %v189, %v1103
    %v1151 = vadd.f32 %v191, %v1105
    %v1152 = vadd.f32 %v230, %v1144
    %v1153 = vadd.f32 %v232, %v1146
    %v1154 = vxor.u32 %v1150, 2147483648
    %v1155 = vmul.f32 %v1154, 1.442695
    %v1156 = vpow.pop %v1155
    %v1157 = vadd.f32 %v1156, 1.0
    %v1158 = vrcp.pop %v1157
    %v1159 = vmul.f32 1.0, %v1158
    %v1160 = vxor.u32 %v1151, 2147483648
    %v1161 = vmul.f32 %v1160, 1.442695
    %v1162 = vpow.pop %v1161
    %v1163 = vadd.f32 %v1162, 1.0
    %v1164 = vrcp.pop %v1163
    %v1165 = vmul.f32 1.0, %v1164
    %v1166 = vtanh.pop %v1152
    %v1167 = vxor.u32 %v1153, 2147483648
    %v1168 = vmul.f32 %v1167, 1.442695
    %v1169 = vpow.pop %v1168
    %v1170 = vadd.f32 %v1169, 1.0
    %v1171 = vrcp.pop %v1170
    %v1172 = vmul.f32 1.0, %v1171
    %v1173 = vmul.f32 %v1165, %v855
    %v1174 = vmul.f32 %v1159, %v1166
    %v1175 = vadd.f32 %v1173, %v1174
    %v1176 = vtanh.pop %v1175
    %v1177 = vmul.f32 %v1172, %v1176
    %v1178 = vpack.c.bf16 %v1177, %v1177
    %v1180 = vrot.slane %v1178, 7
    %vm1182 = vcmask 1041409
    %vm1183 = vsmask.f32 1280
    %vm1184 = vmand %vm1182, %vm1183
    %v1185 = vld [vmem:[#allocation2] sm:$0x2]
    %v1186 = vsel %vm1184, %v1180, %v1185
    %1187 = vst [vmem:[#allocation2] sm:$0x2] %v1186
    %v1189 = vshrl.u32 %v1178, 16
    %v1191 = vrot.slane %v1189, 3
    %vm1193 = vcmask 1045509
    %vm1194 = vsmask.f32 5376
    %vm1195 = vmand %vm1193, %vm1194
    %v1196 = vld [vmem:[#allocation2] sm:$0x20]
    %v1197 = vsel %vm1195, %v1191, %v1196
    %1198 = vst [vmem:[#allocation2] sm:$0x20] %v1197
    %v1199 = vld [vmem:[#allocation8] sm:$0xff]
    %v1200 = vld [vmem:[#allocation8 + $0x8] sm:$0xff]
    %v1201 = vld [vmem:[#allocation8 + $0x10] sm:$0xff]
    %v1202 = vld [vmem:[#allocation8 + $0x18] sm:$0xff]
    %v1203 = vld [vmem:[#allocation8 + $0x20] sm:$0xff]
    %v1204 = vld [vmem:[#allocation8 + $0x28] sm:$0xff]
    %v1205 = vld [vmem:[#allocation8 + $0x30] sm:$0xff]
    %v1206 = vld [vmem:[#allocation8 + $0x38] sm:$0xff]
    %v1207 = vld [vmem:[#allocation8 + $0x40] sm:$0xff]
    %v1208 = vld [vmem:[#allocation8 + $0x48] sm:$0xff]
    %v1209 = vld [vmem:[#allocation8 + $0x50] sm:$0xff]
    %v1210 = vld [vmem:[#allocation8 + $0x58] sm:$0xff]
    %v1211 = vld [vmem:[#allocation8 + $0x60] sm:$0xff]
    %v1212 = vld [vmem:[#allocation8 + $0x68] sm:$0xff]
    %v1213 = vld [vmem:[#allocation8 + $0x70] sm:$0xff]
    %v1214 = vld [vmem:[#allocation8 + $0x78] sm:$0xff]
    %v1215 = vld [vmem:[#allocation8 + $0x80] sm:$0xff]
    %v1216 = vld [vmem:[#allocation8 + $0x88] sm:$0xff]
    %v1217 = vld [vmem:[#allocation8 + $0x90] sm:$0xff]
    %v1218 = vld [vmem:[#allocation8 + $0x98] sm:$0xff]
    %v1219 = vld [vmem:[#allocation8 + $0xa0] sm:$0xff]
    %v1220 = vld [vmem:[#allocation8 + $0xa8] sm:$0xff]
    %v1221 = vld [vmem:[#allocation8 + $0xb0] sm:$0xff]
    %v1222 = vld [vmem:[#allocation8 + $0xb8] sm:$0xff]
    %v1223 = vld [vmem:[#allocation8 + $0xc0] sm:$0xff]
    %v1224 = vld [vmem:[#allocation8 + $0xc8] sm:$0xff]
    %v1225 = vld [vmem:[#allocation8 + $0xd0] sm:$0xff]
    %v1226 = vld [vmem:[#allocation8 + $0xd8] sm:$0xff]
    %v1227 = vld [vmem:[#allocation8 + $0xe0] sm:$0xff]
    %v1228 = vld [vmem:[#allocation8 + $0xe8] sm:$0xff]
    %v1229 = vld [vmem:[#allocation8 + $0xf0] sm:$0xff]
    %v1230 = vld [vmem:[#allocation8 + $0xf8] sm:$0xff]
    %v1263 = vunpack.c.l.b16 %v1199
    %v1264 = vunpack.c.h.b16 %v1199
    %v1265 = vunpack.c.l.b16 %v1200
    %v1266 = vunpack.c.h.b16 %v1200
    %v1267 = vunpack.c.l.b16 %v1201
    %v1268 = vunpack.c.h.b16 %v1201
    %v1269 = vunpack.c.l.b16 %v1202
    %v1270 = vunpack.c.h.b16 %v1202
    %v1271 = vunpack.c.l.b16 %v1203
    %v1272 = vunpack.c.h.b16 %v1203
    %v1273 = vunpack.c.l.b16 %v1204
    %v1274 = vunpack.c.h.b16 %v1204
    %v1275 = vunpack.c.l.b16 %v1205
    %v1276 = vunpack.c.h.b16 %v1205
    %v1277 = vunpack.c.l.b16 %v1206
    %v1278 = vunpack.c.h.b16 %v1206
    %v1279 = vunpack.c.l.b16 %v1207
    %v1280 = vunpack.c.h.b16 %v1207
    %v1281 = vunpack.c.l.b16 %v1208
    %v1282 = vunpack.c.h.b16 %v1208
    %v1283 = vunpack.c.l.b16 %v1209
    %v1284 = vunpack.c.h.b16 %v1209
    %v1285 = vunpack.c.l.b16 %v1210
    %v1286 = vunpack.c.h.b16 %v1210
    %v1287 = vunpack.c.l.b16 %v1211
    %v1288 = vunpack.c.h.b16 %v1211
    %v1289 = vunpack.c.l.b16 %v1212
    %v1290 = vunpack.c.h.b16 %v1212
    %v1291 = vunpack.c.l.b16 %v1213
    %v1292 = vunpack.c.h.b16 %v1213
    %v1293 = vunpack.c.l.b16 %v1214
    %v1294 = vunpack.c.h.b16 %v1214
    %v1295 = vunpack.c.l.b16 %v1215
    %v1296 = vunpack.c.h.b16 %v1215
    %v1297 = vunpack.c.l.b16 %v1216
    %v1298 = vunpack.c.h.b16 %v1216
    %v1299 = vunpack.c.l.b16 %v1217
    %v1300 = vunpack.c.h.b16 %v1217
    %v1301 = vunpack.c.l.b16 %v1218
    %v1302 = vunpack.c.h.b16 %v1218
    %v1303 = vunpack.c.l.b16 %v1219
    %v1304 = vunpack.c.h.b16 %v1219
    %v1305 = vunpack.c.l.b16 %v1220
    %v1306 = vunpack.c.h.b16 %v1220
    %v1307 = vunpack.c.l.b16 %v1221
    %v1308 = vunpack.c.h.b16 %v1221
    %v1309 = vunpack.c.l.b16 %v1222
    %v1310 = vunpack.c.h.b16 %v1222
    %v1311 = vunpack.c.l.b16 %v1223
    %v1312 = vunpack.c.h.b16 %v1223
    %v1313 = vunpack.c.l.b16 %v1224
    %v1314 = vunpack.c.h.b16 %v1224
    %v1315 = vunpack.c.l.b16 %v1225
    %v1316 = vunpack.c.h.b16 %v1225
    %v1317 = vunpack.c.l.b16 %v1226
    %v1318 = vunpack.c.h.b16 %v1226
    %v1319 = vunpack.c.l.b16 %v1227
    %v1320 = vunpack.c.h.b16 %v1227
    %v1321 = vunpack.c.l.b16 %v1228
    %v1322 = vunpack.c.h.b16 %v1228
    %v1323 = vunpack.c.l.b16 %v1229
    %v1324 = vunpack.c.h.b16 %v1229
    %v1325 = vunpack.c.l.b16 %v1230
    %v1326 = vunpack.c.h.b16 %v1230
    %v1327 = vpack.c.b16 %v1267, %v1263
    %v1328 = vpack.c.b16 %v1268, %v1264
    %v1329 = vpack.c.b16 %v1269, %v1265
    %v1330 = vpack.c.b16 %v1270, %v1266
    %v1331 = vpack.c.b16 %v1275, %v1271
    %v1332 = vpack.c.b16 %v1276, %v1272
    %v1333 = vpack.c.b16 %v1277, %v1273
    %v1334 = vpack.c.b16 %v1278, %v1274
    %v1335 = vpack.c.b16 %v1283, %v1279
    %v1336 = vpack.c.b16 %v1284, %v1280
    %v1337 = vpack.c.b16 %v1285, %v1281
    %v1338 = vpack.c.b16 %v1286, %v1282
    %v1339 = vpack.c.b16 %v1291, %v1287
    %v1340 = vpack.c.b16 %v1292, %v1288
    %v1341 = vpack.c.b16 %v1293, %v1289
    %v1342 = vpack.c.b16 %v1294, %v1290
    %v1343 = vpack.c.b16 %v1299, %v1295
    %v1344 = vpack.c.b16 %v1300, %v1296
    %v1345 = vpack.c.b16 %v1301, %v1297
    %v1346 = vpack.c.b16 %v1302, %v1298
    %v1347 = vpack.c.b16 %v1307, %v1303
    %v1348 = vpack.c.b16 %v1308, %v1304
    %v1349 = vpack.c.b16 %v1309, %v1305
    %v1350 = vpack.c.b16 %v1310, %v1306
    %v1351 = vpack.c.b16 %v1315, %v1311
    %v1352 = vpack.c.b16 %v1316, %v1312
    %v1353 = vpack.c.b16 %v1317, %v1313
    %v1354 = vpack.c.b16 %v1318, %v1314
    %v1355 = vpack.c.b16 %v1323, %v1319
    %v1356 = vpack.c.b16 %v1324, %v1320
    %v1357 = vpack.c.b16 %v1325, %v1321
    %v1358 = vpack.c.b16 %v1326, %v1322
    %1391 = vmatprep.subr.bf16.mxu0 %v1328
    %1392 = vmatpush1.bf16.msra.mxu0 %v1327
    %1393 = vmatprep.subr.bf16.mxu0 %v1332
    %1394 = vmatpush1.bf16.msra.mxu0 %v1331
    %1395 = vmatprep.subr.bf16.mxu0 %v1336
    %1396 = vmatpush1.bf16.msra.mxu0 %v1335
    %1397 = vmatprep.subr.bf16.mxu0 %v1340
    %1398 = vmatpush1.bf16.msra.mxu0 %v1339
    %1399 = vmatprep.subr.bf16.mxu0 %v1344
    %1400 = vmatpush1.bf16.msra.mxu0 %v1343
    %1401 = vmatprep.subr.bf16.mxu0 %v1348
    %1402 = vmatpush1.bf16.msra.mxu0 %v1347
    %1403 = vmatprep.subr.bf16.mxu0 %v1352
    %1404 = vmatpush1.bf16.msra.mxu0 %v1351
    %1405 = vmatprep.subr.bf16.mxu0 %v1356
    %1406 = vmatpush1.bf16.msra.mxu0 %v1355
    %1407 = vmatprep.subr.bf16.mxu0 0
    %1408 = vmatpush1.bf16.msra.mxu0 0
    %1409 = vmatprep.subr.bf16.mxu0 0
    %1410 = vmatpush1.bf16.msra.mxu0 0
    %1411 = vmatprep.subr.bf16.mxu0 0
    %1412 = vmatpush1.bf16.msra.mxu0 0
    %1413 = vmatprep.subr.bf16.mxu0 0
    %1414 = vmatpush1.bf16.msra.mxu0 0
    %1415 = vmatprep.subr.bf16.mxu0 0
    %1416 = vmatpush1.bf16.msra.mxu0 0
    %1417 = vmatprep.subr.bf16.mxu0 0
    %1418 = vmatpush1.bf16.msra.mxu0 0
    %1419 = vmatprep.subr.bf16.mxu0 0
    %1420 = vmatpush1.bf16.msra.mxu0 0
    %1421 = vmatprep.subr.bf16.mxu0 0
    %1422 = vmatpush1.bf16.msra.mxu0 0
    %1423 = vmatprep.mubr.bf16.mxu0 0
    %1424 = vmatmul.mubr.bf16.gmra.mrb[0].mxu0 %v1178
    %v1425 = vpop.f32.mrb[0].mxu0
    %v1426 = vadd.f32 0.0, %v1425
    %v1427 = vpop.f32.mrb[0].mxu0
    %v1428 = vadd.f32 0.0, %v1427
    %v1429 = vpop.f32.mrb[0].mxu0
    %v1430 = vpop.f32.mrb[0].mxu0
    %1431 = vdwg.mxu0
    %1432 = vmatprep.subr.bf16.mxu0 %v1330
    %1433 = vmatpush1.bf16.msra.mxu0 %v1329
    %1434 = vmatprep.subr.bf16.mxu0 %v1334
    %1435 = vmatpush1.bf16.msra.mxu0 %v1333
    %1436 = vmatprep.subr.bf16.mxu0 %v1338
    %1437 = vmatpush1.bf16.msra.mxu0 %v1337
    %1438 = vmatprep.subr.bf16.mxu0 %v1342
    %1439 = vmatpush1.bf16.msra.mxu0 %v1341
    %1440 = vmatprep.subr.bf16.mxu0 %v1346
    %1441 = vmatpush1.bf16.msra.mxu0 %v1345
    %1442 = vmatprep.subr.bf16.mxu0 %v1350
    %1443 = vmatpush1.bf16.msra.mxu0 %v1349
    %1444 = vmatprep.subr.bf16.mxu0 %v1354
    %1445 = vmatpush1.bf16.msra.mxu0 %v1353
    %1446 = vmatprep.subr.bf16.mxu0 %v1358
    %1447 = vmatpush1.bf16.msra.mxu0 %v1357
    %1448 = vmatprep.subr.bf16.mxu0 0
    %1449 = vmatpush1.bf16.msra.mxu0 0
    %1450 = vmatprep.subr.bf16.mxu0 0
    %1451 = vmatpush1.bf16.msra.mxu0 0
    %1452 = vmatprep.subr.bf16.mxu0 0
    %1453 = vmatpush1.bf16.msra.mxu0 0
    %1454 = vmatprep.subr.bf16.mxu0 0
    %1455 = vmatpush1.bf16.msra.mxu0 0
    %1456 = vmatprep.subr.bf16.mxu0 0
    %1457 = vmatpush1.bf16.msra.mxu0 0
    %1458 = vmatprep.subr.bf16.mxu0 0
    %1459 = vmatpush1.bf16.msra.mxu0 0
    %1460 = vmatprep.subr.bf16.mxu0 0
    %1461 = vmatpush1.bf16.msra.mxu0 0
    %1462 = vmatprep.subr.bf16.mxu0 0
    %1463 = vmatpush1.bf16.msra.mxu0 0
    %1464 = vmatprep.mubr.bf16.mxu0 0
    %1465 = vmatmul.mubr.bf16.gmra.mrb[0].mxu0 %v1178
    %v1466 = vpop.f32.mrb[0].mxu0
    %v1467 = vadd.f32 0.0, %v1466
    %v1468 = vpop.f32.mrb[0].mxu0
    %v1469 = vadd.f32 0.0, %v1468
    %v1470 = vpop.f32.mrb[0].mxu0
    %v1471 = vpop.f32.mrb[0].mxu0
    %1472 = vdwg.mxu0
    %v1473 = vadd.f32 %v189, %v1426
    %v1474 = vadd.f32 %v191, %v1428
    %v1475 = vadd.f32 %v230, %v1467
    %v1476 = vadd.f32 %v232, %v1469
    %v1477 = vxor.u32 %v1473, 2147483648
    %v1478 = vmul.f32 %v1477, 1.442695
    %v1479 = vpow.pop %v1478
    %v1480 = vadd.f32 %v1479, 1.0
    %v1481 = vrcp.pop %v1480
    %v1482 = vmul.f32 1.0, %v1481
    %v1483 = vxor.u32 %v1474, 2147483648
    %v1484 = vmul.f32 %v1483, 1.442695
    %v1485 = vpow.pop %v1484
    %v1486 = vadd.f32 %v1485, 1.0
    %v1487 = vrcp.pop %v1486
    %v1488 = vmul.f32 1.0, %v1487
    %v1489 = vtanh.pop %v1475
    %v1490 = vxor.u32 %v1476, 2147483648
    %v1491 = vmul.f32 %v1490, 1.442695
    %v1492 = vpow.pop %v1491
    %v1493 = vadd.f32 %v1492, 1.0
    %v1494 = vrcp.pop %v1493
    %v1495 = vmul.f32 1.0, %v1494
    %v1496 = vmul.f32 %v1488, %v1175
    %v1497 = vmul.f32 %v1482, %v1489
    %v1498 = vadd.f32 %v1496, %v1497
    %v1499 = vtanh.pop %v1498
    %v1500 = vmul.f32 %v1495, %v1499
    %v1501 = vpack.c.bf16 %v1500, %v1500
    %v1503 = vshll.u32 %v1501, 16
    %v1505 = vrot.slane %v1503, 7
    %vm1507 = vsmask.f32 7942
    %vm1508 = vmand %vm1182, %vm1507
    %v1509 = vld [vmem:[#allocation2] sm:$0x2]
    %v1510 = vsel %vm1508, %v1505, %v1509
    %1511 = vst [vmem:[#allocation2] sm:$0x2] %v1510
    %v1513 = vrot.slane %v1501, 3
    %vm1515 = vsmask.f32 7958
    %vm1516 = vmand %vm1193, %vm1515
    %v1517 = vld [vmem:[#allocation2] sm:$0x20]
    %v1518 = vsel %vm1516, %v1513, %v1517
    %1519 = vst [vmem:[#allocation2] sm:$0x20] %v1518
    %v1520 = vld [vmem:[#allocation8] sm:$0xff]
    %v1521 = vld [vmem:[#allocation8 + $0x8] sm:$0xff]
    %v1522 = vld [vmem:[#allocation8 + $0x10] sm:$0xff]
    %v1523 = vld [vmem:[#allocation8 + $0x18] sm:$0xff]
    %v1524 = vld [vmem:[#allocation8 + $0x20] sm:$0xff]
    %v1525 = vld [vmem:[#allocation8 + $0x28] sm:$0xff]
    %v1526 = vld [vmem:[#allocation8 + $0x30] sm:$0xff]
    %v1527 = vld [vmem:[#allocation8 + $0x38] sm:$0xff]
    %v1528 = vld [vmem:[#allocation8 + $0x40] sm:$0xff]
    %v1529 = vld [vmem:[#allocation8 + $0x48] sm:$0xff]
    %v1530 = vld [vmem:[#allocation8 + $0x50] sm:$0xff]
    %v1531 = vld [vmem:[#allocation8 + $0x58] sm:$0xff]
    %v1532 = vld [vmem:[#allocation8 + $0x60] sm:$0xff]
    %v1533 = vld [vmem:[#allocation8 + $0x68] sm:$0xff]
    %v1534 = vld [vmem:[#allocation8 + $0x70] sm:$0xff]
    %v1535 = vld [vmem:[#allocation8 + $0x78] sm:$0xff]
    %v1536 = vld [vmem:[#allocation8 + $0x80] sm:$0xff]
    %v1537 = vld [vmem:[#allocation8 + $0x88] sm:$0xff]
    %v1538 = vld [vmem:[#allocation8 + $0x90] sm:$0xff]
    %v1539 = vld [vmem:[#allocation8 + $0x98] sm:$0xff]
    %v1540 = vld [vmem:[#allocation8 + $0xa0] sm:$0xff]
    %v1541 = vld [vmem:[#allocation8 + $0xa8] sm:$0xff]
    %v1542 = vld [vmem:[#allocation8 + $0xb0] sm:$0xff]
    %v1543 = vld [vmem:[#allocation8 + $0xb8] sm:$0xff]
    %v1544 = vld [vmem:[#allocation8 + $0xc0] sm:$0xff]
    %v1545 = vld [vmem:[#allocation8 + $0xc8] sm:$0xff]
    %v1546 = vld [vmem:[#allocation8 + $0xd0] sm:$0xff]
    %v1547 = vld [vmem:[#allocation8 + $0xd8] sm:$0xff]
    %v1548 = vld [vmem:[#allocation8 + $0xe0] sm:$0xff]
    %v1549 = vld [vmem:[#allocation8 + $0xe8] sm:$0xff]
    %v1550 = vld [vmem:[#allocation8 + $0xf0] sm:$0xff]
    %v1551 = vld [vmem:[#allocation8 + $0xf8] sm:$0xff]
    %v1584 = vunpack.c.l.b16 %v1520
    %v1585 = vunpack.c.h.b16 %v1520
    %v1586 = vunpack.c.l.b16 %v1521
    %v1587 = vunpack.c.h.b16 %v1521
    %v1588 = vunpack.c.l.b16 %v1522
    %v1589 = vunpack.c.h.b16 %v1522
    %v1590 = vunpack.c.l.b16 %v1523
    %v1591 = vunpack.c.h.b16 %v1523
    %v1592 = vunpack.c.l.b16 %v1524
    %v1593 = vunpack.c.h.b16 %v1524
    %v1594 = vunpack.c.l.b16 %v1525
    %v1595 = vunpack.c.h.b16 %v1525
    %v1596 = vunpack.c.l.b16 %v1526
    %v1597 = vunpack.c.h.b16 %v1526
    %v1598 = vunpack.c.l.b16 %v1527
    %v1599 = vunpack.c.h.b16 %v1527
    %v1600 = vunpack.c.l.b16 %v1528
    %v1601 = vunpack.c.h.b16 %v1528
    %v1602 = vunpack.c.l.b16 %v1529
    %v1603 = vunpack.c.h.b16 %v1529
    %v1604 = vunpack.c.l.b16 %v1530
    %v1605 = vunpack.c.h.b16 %v1530
    %v1606 = vunpack.c.l.b16 %v1531
    %v1607 = vunpack.c.h.b16 %v1531
    %v1608 = vunpack.c.l.b16 %v1532
    %v1609 = vunpack.c.h.b16 %v1532
    %v1610 = vunpack.c.l.b16 %v1533
    %v1611 = vunpack.c.h.b16 %v1533
    %v1612 = vunpack.c.l.b16 %v1534
    %v1613 = vunpack.c.h.b16 %v1534
    %v1614 = vunpack.c.l.b16 %v1535
    %v1615 = vunpack.c.h.b16 %v1535
    %v1616 = vunpack.c.l.b16 %v1536
    %v1617 = vunpack.c.h.b16 %v1536
    %v1618 = vunpack.c.l.b16 %v1537
    %v1619 = vunpack.c.h.b16 %v1537
    %v1620 = vunpack.c.l.b16 %v1538
    %v1621 = vunpack.c.h.b16 %v1538
    %v1622 = vunpack.c.l.b16 %v1539
    %v1623 = vunpack.c.h.b16 %v1539
    %v1624 = vunpack.c.l.b16 %v1540
    %v1625 = vunpack.c.h.b16 %v1540
    %v1626 = vunpack.c.l.b16 %v1541
    %v1627 = vunpack.c.h.b16 %v1541
    %v1628 = vunpack.c.l.b16 %v1542
    %v1629 = vunpack.c.h.b16 %v1542
    %v1630 = vunpack.c.l.b16 %v1543
    %v1631 = vunpack.c.h.b16 %v1543
    %v1632 = vunpack.c.l.b16 %v1544
    %v1633 = vunpack.c.h.b16 %v1544
    %v1634 = vunpack.c.l.b16 %v1545
    %v1635 = vunpack.c.h.b16 %v1545
    %v1636 = vunpack.c.l.b16 %v1546
    %v1637 = vunpack.c.h.b16 %v1546
    %v1638 = vunpack.c.l.b16 %v1547
    %v1639 = vunpack.c.h.b16 %v1547
    %v1640 = vunpack.c.l.b16 %v1548
    %v1641 = vunpack.c.h.b16 %v1548
    %v1642 = vunpack.c.l.b16 %v1549
    %v1643 = vunpack.c.h.b16 %v1549
    %v1644 = vunpack.c.l.b16 %v1550
    %v1645 = vunpack.c.h.b16 %v1550
    %v1646 = vunpack.c.l.b16 %v1551
    %v1647 = vunpack.c.h.b16 %v1551
    %v1648 = vpack.c.b16 %v1588, %v1584
    %v1649 = vpack.c.b16 %v1589, %v1585
    %v1650 = vpack.c.b16 %v1590, %v1586
    %v1651 = vpack.c.b16 %v1591, %v1587
    %v1652 = vpack.c.b16 %v1596, %v1592
    %v1653 = vpack.c.b16 %v1597, %v1593
    %v1654 = vpack.c.b16 %v1598, %v1594
    %v1655 = vpack.c.b16 %v1599, %v1595
    %v1656 = vpack.c.b16 %v1604, %v1600
    %v1657 = vpack.c.b16 %v1605, %v1601
    %v1658 = vpack.c.b16 %v1606, %v1602
    %v1659 = vpack.c.b16 %v1607, %v1603
    %v1660 = vpack.c.b16 %v1612, %v1608
    %v1661 = vpack.c.b16 %v1613, %v1609
    %v1662 = vpack.c.b16 %v1614, %v1610
    %v1663 = vpack.c.b16 %v1615, %v1611
    %v1664 = vpack.c.b16 %v1620, %v1616
    %v1665 = vpack.c.b16 %v1621, %v1617
    %v1666 = vpack.c.b16 %v1622, %v1618
    %v1667 = vpack.c.b16 %v1623, %v1619
    %v1668 = vpack.c.b16 %v1628, %v1624
    %v1669 = vpack.c.b16 %v1629, %v1625
    %v1670 = vpack.c.b16 %v1630, %v1626
    %v1671 = vpack.c.b16 %v1631, %v1627
    %v1672 = vpack.c.b16 %v1636, %v1632
    %v1673 = vpack.c.b16 %v1637, %v1633
    %v1674 = vpack.c.b16 %v1638, %v1634
    %v1675 = vpack.c.b16 %v1639, %v1635
    %v1676 = vpack.c.b16 %v1644, %v1640
    %v1677 = vpack.c.b16 %v1645, %v1641
    %v1678 = vpack.c.b16 %v1646, %v1642
    %v1679 = vpack.c.b16 %v1647, %v1643
    %1712 = vmatprep.subr.bf16.mxu0 %v1649
    %1713 = vmatpush1.bf16.msra.mxu0 %v1648
    %1714 = vmatprep.subr.bf16.mxu0 %v1653
    %1715 = vmatpush1.bf16.msra.mxu0 %v1652
    %1716 = vmatprep.subr.bf16.mxu0 %v1657
    %1717 = vmatpush1.bf16.msra.mxu0 %v1656
    %1718 = vmatprep.subr.bf16.mxu0 %v1661
    %1719 = vmatpush1.bf16.msra.mxu0 %v1660
    %1720 = vmatprep.subr.bf16.mxu0 %v1665
    %1721 = vmatpush1.bf16.msra.mxu0 %v1664
    %1722 = vmatprep.subr.bf16.mxu0 %v1669
    %1723 = vmatpush1.bf16.msra.mxu0 %v1668
    %1724 = vmatprep.subr.bf16.mxu0 %v1673
    %1725 = vmatpush1.bf16.msra.mxu0 %v1672
    %1726 = vmatprep.subr.bf16.mxu0 %v1677
    %1727 = vmatpush1.bf16.msra.mxu0 %v1676
    %1728 = vmatprep.subr.bf16.mxu0 0
    %1729 = vmatpush1.bf16.msra.mxu0 0
    %1730 = vmatprep.subr.bf16.mxu0 0
    %1731 = vmatpush1.bf16.msra.mxu0 0
    %1732 = vmatprep.subr.bf16.mxu0 0
    %1733 = vmatpush1.bf16.msra.mxu0 0
    %1734 = vmatprep.subr.bf16.mxu0 0
    %1735 = vmatpush1.bf16.msra.mxu0 0
    %1736 = vmatprep.subr.bf16.mxu0 0
    %1737 = vmatpush1.bf16.msra.mxu0 0
    %1738 = vmatprep.subr.bf16.mxu0 0
    %1739 = vmatpush1.bf16.msra.mxu0 0
    %1740 = vmatprep.subr.bf16.mxu0 0
    %1741 = vmatpush1.bf16.msra.mxu0 0
    %1742 = vmatprep.subr.bf16.mxu0 0
    %1743 = vmatpush1.bf16.msra.mxu0 0
    %1744 = vmatprep.mubr.bf16.mxu0 0
    %1745 = vmatmul.mubr.bf16.gmra.mrb[0].mxu0 %v1501
    %v1746 = vpop.f32.mrb[0].mxu0
    %v1747 = vadd.f32 0.0, %v1746
    %v1748 = vpop.f32.mrb[0].mxu0
    %v1749 = vadd.f32 0.0, %v1748
    %v1750 = vpop.f32.mrb[0].mxu0
    %v1751 = vpop.f32.mrb[0].mxu0
    %1752 = vdwg.mxu0
    %1753 = vmatprep.subr.bf16.mxu0 %v1651
    %1754 = vmatpush1.bf16.msra.mxu0 %v1650
    %1755 = vmatprep.subr.bf16.mxu0 %v1655
    %1756 = vmatpush1.bf16.msra.mxu0 %v1654
    %1757 = vmatprep.subr.bf16.mxu0 %v1659
    %1758 = vmatpush1.bf16.msra.mxu0 %v1658
    %1759 = vmatprep.subr.bf16.mxu0 %v1663
    %1760 = vmatpush1.bf16.msra.mxu0 %v1662
    %1761 = vmatprep.subr.bf16.mxu0 %v1667
    %1762 = vmatpush1.bf16.msra.mxu0 %v1666
    %1763 = vmatprep.subr.bf16.mxu0 %v1671
    %1764 = vmatpush1.bf16.msra.mxu0 %v1670
    %1765 = vmatprep.subr.bf16.mxu0 %v1675
    %1766 = vmatpush1.bf16.msra.mxu0 %v1674
    %1767 = vmatprep.subr.bf16.mxu0 %v1679
    %1768 = vmatpush1.bf16.msra.mxu0 %v1678
    %1769 = vmatprep.subr.bf16.mxu0 0
    %1770 = vmatpush1.bf16.msra.mxu0 0
    %1771 = vmatprep.subr.bf16.mxu0 0
    %1772 = vmatpush1.bf16.msra.mxu0 0
    %1773 = vmatprep.subr.bf16.mxu0 0
    %1774 = vmatpush1.bf16.msra.mxu0 0
    %1775 = vmatprep.subr.bf16.mxu0 0
    %1776 = vmatpush1.bf16.msra.mxu0 0
    %1777 = vmatprep.subr.bf16.mxu0 0
    %1778 = vmatpush1.bf16.msra.mxu0 0
    %1779 = vmatprep.subr.bf16.mxu0 0
    %1780 = vmatpush1.bf16.msra.mxu0 0
    %1781 = vmatprep.subr.bf16.mxu0 0
    %1782 = vmatpush1.bf16.msra.mxu0 0
    %1783 = vmatprep.subr.bf16.mxu0 0
    %1784 = vmatpush1.bf16.msra.mxu0 0
    %1785 = vmatprep.mubr.bf16.mxu0 0
    %1786 = vmatmul.mubr.bf16.gmra.mrb[0].mxu0 %v1501
    %v1787 = vpop.f32.mrb[0].mxu0
    %v1788 = vadd.f32 0.0, %v1787
    %v1789 = vpop.f32.mrb[0].mxu0
    %v1790 = vadd.f32 0.0, %v1789
    %v1791 = vpop.f32.mrb[0].mxu0
    %v1792 = vpop.f32.mrb[0].mxu0
    %1793 = vdwg.mxu0
    %v1794 = vadd.f32 %v189, %v1747
    %v1795 = vadd.f32 %v191, %v1749
    %v1796 = vadd.f32 %v230, %v1788
    %v1797 = vadd.f32 %v232, %v1790
    %v1798 = vxor.u32 %v1794, 2147483648
    %v1799 = vmul.f32 %v1798, 1.442695
    %v1800 = vpow.pop %v1799
    %v1801 = vadd.f32 %v1800, 1.0
    %v1802 = vrcp.pop %v1801
    %v1803 = vmul.f32 1.0, %v1802
    %v1804 = vxor.u32 %v1795, 2147483648
    %v1805 = vmul.f32 %v1804, 1.442695
    %v1806 = vpow.pop %v1805
    %v1807 = vadd.f32 %v1806, 1.0
    %v1808 = vrcp.pop %v1807
    %v1809 = vmul.f32 1.0, %v1808
    %v1810 = vtanh.pop %v1796
    %v1811 = vxor.u32 %v1797, 2147483648
    %v1812 = vmul.f32 %v1811, 1.442695
    %v1813 = vpow.pop %v1812
    %v1814 = vadd.f32 %v1813, 1.0
    %v1815 = vrcp.pop %v1814
    %v1816 = vmul.f32 1.0, %v1815
    %v1817 = vmul.f32 %v1809, %v1498
    %v1818 = vmul.f32 %v1803, %v1810
    %v1819 = vadd.f32 %v1817, %v1818
    %v1820 = vtanh.pop %v1819
    %v1821 = vmul.f32 %v1816, %v1820
    %v1822 = vpack.c.bf16 %v1821, %v1821
    %v1824 = vrot.slane %v1822, 6
    %vm1826 = vcmask 1042434
    %vm1827 = vsmask.f32 2304
    %vm1828 = vmand %vm1826, %vm1827
    %v1829 = vld [vmem:[#allocation2] sm:$0x4]
    %v1830 = vsel %vm1828, %v1824, %v1829
    %1831 = vst [vmem:[#allocation2] sm:$0x4] %v1830
    %v1833 = vshrl.u32 %v1822, 16
    %v1835 = vrot.slane %v1833, 2
    %vm1837 = vcmask 1046534
    %vm1838 = vsmask.f32 6400
    %vm1839 = vmand %vm1837, %vm1838
    %v1840 = vld [vmem:[#allocation2] sm:$0x40]
    %v1841 = vsel %vm1839, %v1835, %v1840
    %1842 = vst [vmem:[#allocation2] sm:$0x40] %v1841
    %v1843 = vld [vmem:[#allocation8] sm:$0xff]
    %v1844 = vld [vmem:[#allocation8 + $0x8] sm:$0xff]
    %v1845 = vld [vmem:[#allocation8 + $0x10] sm:$0xff]
    %v1846 = vld [vmem:[#allocation8 + $0x18] sm:$0xff]
    %v1847 = vld [vmem:[#allocation8 + $0x20] sm:$0xff]
    %v1848 = vld [vmem:[#allocation8 + $0x28] sm:$0xff]
    %v1849 = vld [vmem:[#allocation8 + $0x30] sm:$0xff]
    %v1850 = vld [vmem:[#allocation8 + $0x38] sm:$0xff]
    %v1851 = vld [vmem:[#allocation8 + $0x40] sm:$0xff]
    %v1852 = vld [vmem:[#allocation8 + $0x48] sm:$0xff]
    %v1853 = vld [vmem:[#allocation8 + $0x50] sm:$0xff]
    %v1854 = vld [vmem:[#allocation8 + $0x58] sm:$0xff]
    %v1855 = vld [vmem:[#allocation8 + $0x60] sm:$0xff]
    %v1856 = vld [vmem:[#allocation8 + $0x68] sm:$0xff]
    %v1857 = vld [vmem:[#allocation8 + $0x70] sm:$0xff]
    %v1858 = vld [vmem:[#allocation8 + $0x78] sm:$0xff]
    %v1859 = vld [vmem:[#allocation8 + $0x80] sm:$0xff]
    %v1860 = vld [vmem:[#allocation8 + $0x88] sm:$0xff]
    %v1861 = vld [vmem:[#allocation8 + $0x90] sm:$0xff]
    %v1862 = vld [vmem:[#allocation8 + $0x98] sm:$0xff]
    %v1863 = vld [vmem:[#allocation8 + $0xa0] sm:$0xff]
    %v1864 = vld [vmem:[#allocation8 + $0xa8] sm:$0xff]
    %v1865 = vld [vmem:[#allocation8 + $0xb0] sm:$0xff]
    %v1866 = vld [vmem:[#allocation8 + $0xb8] sm:$0xff]
    %v1867 = vld [vmem:[#allocation8 + $0xc0] sm:$0xff]
    %v1868 = vld [vmem:[#allocation8 + $0xc8] sm:$0xff]
    %v1869 = vld [vmem:[#allocation8 + $0xd0] sm:$0xff]
    %v1870 = vld [vmem:[#allocation8 + $0xd8] sm:$0xff]
    %v1871 = vld [vmem:[#allocation8 + $0xe0] sm:$0xff]
    %v1872 = vld [vmem:[#allocation8 + $0xe8] sm:$0xff]
    %v1873 = vld [vmem:[#allocation8 + $0xf0] sm:$0xff]
    %v1874 = vld [vmem:[#allocation8 + $0xf8] sm:$0xff]
    %v1907 = vunpack.c.l.b16 %v1843
    %v1908 = vunpack.c.h.b16 %v1843
    %v1909 = vunpack.c.l.b16 %v1844
    %v1910 = vunpack.c.h.b16 %v1844
    %v1911 = vunpack.c.l.b16 %v1845
    %v1912 = vunpack.c.h.b16 %v1845
    %v1913 = vunpack.c.l.b16 %v1846
    %v1914 = vunpack.c.h.b16 %v1846
    %v1915 = vunpack.c.l.b16 %v1847
    %v1916 = vunpack.c.h.b16 %v1847
    %v1917 = vunpack.c.l.b16 %v1848
    %v1918 = vunpack.c.h.b16 %v1848
    %v1919 = vunpack.c.l.b16 %v1849
    %v1920 = vunpack.c.h.b16 %v1849
    %v1921 = vunpack.c.l.b16 %v1850
    %v1922 = vunpack.c.h.b16 %v1850
    %v1923 = vunpack.c.l.b16 %v1851
    %v1924 = vunpack.c.h.b16 %v1851
    %v1925 = vunpack.c.l.b16 %v1852
    %v1926 = vunpack.c.h.b16 %v1852
    %v1927 = vunpack.c.l.b16 %v1853
    %v1928 = vunpack.c.h.b16 %v1853
    %v1929 = vunpack.c.l.b16 %v1854
    %v1930 = vunpack.c.h.b16 %v1854
    %v1931 = vunpack.c.l.b16 %v1855
    %v1932 = vunpack.c.h.b16 %v1855
    %v1933 = vunpack.c.l.b16 %v1856
    %v1934 = vunpack.c.h.b16 %v1856
    %v1935 = vunpack.c.l.b16 %v1857
    %v1936 = vunpack.c.h.b16 %v1857
    %v1937 = vunpack.c.l.b16 %v1858
    %v1938 = vunpack.c.h.b16 %v1858
    %v1939 = vunpack.c.l.b16 %v1859
    %v1940 = vunpack.c.h.b16 %v1859
    %v1941 = vunpack.c.l.b16 %v1860
    %v1942 = vunpack.c.h.b16 %v1860
    %v1943 = vunpack.c.l.b16 %v1861
    %v1944 = vunpack.c.h.b16 %v1861
    %v1945 = vunpack.c.l.b16 %v1862
    %v1946 = vunpack.c.h.b16 %v1862
    %v1947 = vunpack.c.l.b16 %v1863
    %v1948 = vunpack.c.h.b16 %v1863
    %v1949 = vunpack.c.l.b16 %v1864
    %v1950 = vunpack.c.h.b16 %v1864
    %v1951 = vunpack.c.l.b16 %v1865
    %v1952 = vunpack.c.h.b16 %v1865
    %v1953 = vunpack.c.l.b16 %v1866
    %v1954 = vunpack.c.h.b16 %v1866
    %v1955 = vunpack.c.l.b16 %v1867
    %v1956 = vunpack.c.h.b16 %v1867
    %v1957 = vunpack.c.l.b16 %v1868
    %v1958 = vunpack.c.h.b16 %v1868
    %v1959 = vunpack.c.l.b16 %v1869
    %v1960 = vunpack.c.h.b16 %v1869
    %v1961 = vunpack.c.l.b16 %v1870
    %v1962 = vunpack.c.h.b16 %v1870
    %v1963 = vunpack.c.l.b16 %v1871
    %v1964 = vunpack.c.h.b16 %v1871
    %v1965 = vunpack.c.l.b16 %v1872
    %v1966 = vunpack.c.h.b16 %v1872
    %v1967 = vunpack.c.l.b16 %v1873
    %v1968 = vunpack.c.h.b16 %v1873
    %v1969 = vunpack.c.l.b16 %v1874
    %v1970 = vunpack.c.h.b16 %v1874
    %v1971 = vpack.c.b16 %v1911, %v1907
    %v1972 = vpack.c.b16 %v1912, %v1908
    %v1973 = vpack.c.b16 %v1913, %v1909
    %v1974 = vpack.c.b16 %v1914, %v1910
    %v1975 = vpack.c.b16 %v1919, %v1915
    %v1976 = vpack.c.b16 %v1920, %v1916
    %v1977 = vpack.c.b16 %v1921, %v1917
    %v1978 = vpack.c.b16 %v1922, %v1918
    %v1979 = vpack.c.b16 %v1927, %v1923
    %v1980 = vpack.c.b16 %v1928, %v1924
    %v1981 = vpack.c.b16 %v1929, %v1925
    %v1982 = vpack.c.b16 %v1930, %v1926
    %v1983 = vpack.c.b16 %v1935, %v1931
    %v1984 = vpack.c.b16 %v1936, %v1932
    %v1985 = vpack.c.b16 %v1937, %v1933
    %v1986 = vpack.c.b16 %v1938, %v1934
    %v1987 = vpack.c.b16 %v1943, %v1939
    %v1988 = vpack.c.b16 %v1944, %v1940
    %v1989 = vpack.c.b16 %v1945, %v1941
    %v1990 = vpack.c.b16 %v1946, %v1942
    %v1991 = vpack.c.b16 %v1951, %v1947
    %v1992 = vpack.c.b16 %v1952, %v1948
    %v1993 = vpack.c.b16 %v1953, %v1949
    %v1994 = vpack.c.b16 %v1954, %v1950
    %v1995 = vpack.c.b16 %v1959, %v1955
    %v1996 = vpack.c.b16 %v1960, %v1956
    %v1997 = vpack.c.b16 %v1961, %v1957
    %v1998 = vpack.c.b16 %v1962, %v1958
    %v1999 = vpack.c.b16 %v1967, %v1963
    %v2000 = vpack.c.b16 %v1968, %v1964
    %v2001 = vpack.c.b16 %v1969, %v1965
    %v2002 = vpack.c.b16 %v1970, %v1966
    %2035 = vmatprep.subr.bf16.mxu0 %v1972
    %2036 = vmatpush1.bf16.msra.mxu0 %v1971
    %2037 = vmatprep.subr.bf16.mxu0 %v1976
    %2038 = vmatpush1.bf16.msra.mxu0 %v1975
    %2039 = vmatprep.subr.bf16.mxu0 %v1980
    %2040 = vmatpush1.bf16.msra.mxu0 %v1979
    %2041 = vmatprep.subr.bf16.mxu0 %v1984
    %2042 = vmatpush1.bf16.msra.mxu0 %v1983
    %2043 = vmatprep.subr.bf16.mxu0 %v1988
    %2044 = vmatpush1.bf16.msra.mxu0 %v1987
    %2045 = vmatprep.subr.bf16.mxu0 %v1992
    %2046 = vmatpush1.bf16.msra.mxu0 %v1991
    %2047 = vmatprep.subr.bf16.mxu0 %v1996
    %2048 = vmatpush1.bf16.msra.mxu0 %v1995
    %2049 = vmatprep.subr.bf16.mxu0 %v2000
    %2050 = vmatpush1.bf16.msra.mxu0 %v1999
    %2051 = vmatprep.subr.bf16.mxu0 0
    %2052 = vmatpush1.bf16.msra.mxu0 0
    %2053 = vmatprep.subr.bf16.mxu0 0
    %2054 = vmatpush1.bf16.msra.mxu0 0
    %2055 = vmatprep.subr.bf16.mxu0 0
    %2056 = vmatpush1.bf16.msra.mxu0 0
    %2057 = vmatprep.subr.bf16.mxu0 0
    %2058 = vmatpush1.bf16.msra.mxu0 0
    %2059 = vmatprep.subr.bf16.mxu0 0
    %2060 = vmatpush1.bf16.msra.mxu0 0
    %2061 = vmatprep.subr.bf16.mxu0 0
    %2062 = vmatpush1.bf16.msra.mxu0 0
    %2063 = vmatprep.subr.bf16.mxu0 0
    %2064 = vmatpush1.bf16.msra.mxu0 0
    %2065 = vmatprep.subr.bf16.mxu0 0
    %2066 = vmatpush1.bf16.msra.mxu0 0
    %2067 = vmatprep.mubr.bf16.mxu0 0
    %2068 = vmatmul.mubr.bf16.gmra.mrb[0].mxu0 %v1822
    %v2069 = vpop.f32.mrb[0].mxu0
    %v2070 = vadd.f32 0.0, %v2069
    %v2071 = vpop.f32.mrb[0].mxu0
    %v2072 = vadd.f32 0.0, %v2071
    %v2073 = vpop.f32.mrb[0].mxu0
    %v2074 = vpop.f32.mrb[0].mxu0
    %2075 = vdwg.mxu0
    %2076 = vmatprep.subr.bf16.mxu0 %v1974
    %2077 = vmatpush1.bf16.msra.mxu0 %v1973
    %2078 = vmatprep.subr.bf16.mxu0 %v1978
    %2079 = vmatpush1.bf16.msra.mxu0 %v1977
    %2080 = vmatprep.subr.bf16.mxu0 %v1982
    %2081 = vmatpush1.bf16.msra.mxu0 %v1981
    %2082 = vmatprep.subr.bf16.mxu0 %v1986
    %2083 = vmatpush1.bf16.msra.mxu0 %v1985
    %2084 = vmatprep.subr.bf16.mxu0 %v1990
    %2085 = vmatpush1.bf16.msra.mxu0 %v1989
    %2086 = vmatprep.subr.bf16.mxu0 %v1994
    %2087 = vmatpush1.bf16.msra.mxu0 %v1993
    %2088 = vmatprep.subr.bf16.mxu0 %v1998
    %2089 = vmatpush1.bf16.msra.mxu0 %v1997
    %2090 = vmatprep.subr.bf16.mxu0 %v2002
    %2091 = vmatpush1.bf16.msra.mxu0 %v2001
    %2092 = vmatprep.subr.bf16.mxu0 0
    %2093 = vmatpush1.bf16.msra.mxu0 0
    %2094 = vmatprep.subr.bf16.mxu0 0
    %2095 = vmatpush1.bf16.msra.mxu0 0
    %2096 = vmatprep.subr.bf16.mxu0 0
    %2097 = vmatpush1.bf16.msra.mxu0 0
    %2098 = vmatprep.subr.bf16.mxu0 0
    %2099 = vmatpush1.bf16.msra.mxu0 0
    %2100 = vmatprep.subr.bf16.mxu0 0
    %2101 = vmatpush1.bf16.msra.mxu0 0
    %2102 = vmatprep.subr.bf16.mxu0 0
    %2103 = vmatpush1.bf16.msra.mxu0 0
    %2104 = vmatprep.subr.bf16.mxu0 0
    %2105 = vmatpush1.bf16.msra.mxu0 0
    %2106 = vmatprep.subr.bf16.mxu0 0
    %2107 = vmatpush1.bf16.msra.mxu0 0
    %2108 = vmatprep.mubr.bf16.mxu0 0
    %2109 = vmatmul.mubr.bf16.gmra.mrb[0].mxu0 %v1822
    %v2110 = vpop.f32.mrb[0].mxu0
    %v2111 = vadd.f32 0.0, %v2110
    %v2112 = vpop.f32.mrb[0].mxu0
    %v2113 = vadd.f32 0.0, %v2112
    %v2114 = vpop.f32.mrb[0].mxu0
    %v2115 = vpop.f32.mrb[0].mxu0
    %2116 = vdwg.mxu0
    %v2117 = vadd.f32 %v189, %v2070
    %v2118 = vadd.f32 %v191, %v2072
    %v2119 = vadd.f32 %v230, %v2111
    %v2120 = vadd.f32 %v232, %v2113
    %v2121 = vxor.u32 %v2117, 2147483648
    %v2122 = vmul.f32 %v2121, 1.442695
    %v2123 = vpow.pop %v2122
    %v2124 = vadd.f32 %v2123, 1.0
    %v2125 = vrcp.pop %v2124
    %v2126 = vmul.f32 1.0, %v2125
    %v2127 = vxor.u32 %v2118, 2147483648
    %v2128 = vmul.f32 %v2127, 1.442695
    %v2129 = vpow.pop %v2128
    %v2130 = vadd.f32 %v2129, 1.0
    %v2131 = vrcp.pop %v2130
    %v2132 = vmul.f32 1.0, %v2131
    %v2133 = vtanh.pop %v2119
    %v2134 = vxor.u32 %v2120, 2147483648
    %v2135 = vmul.f32 %v2134, 1.442695
    %v2136 = vpow.pop %v2135
    %v2137 = vadd.f32 %v2136, 1.0
    %v2138 = vrcp.pop %v2137
    %v2139 = vmul.f32 1.0, %v2138
    %v2140 = vmul.f32 %v2132, %v1819
    %v2141 = vmul.f32 %v2126, %v2133
    %v2142 = vadd.f32 %v2140, %v2141
    %v2143 = vtanh.pop %v2142
    %v2144 = vmul.f32 %v2139, %v2143
    %v2145 = vpack.c.bf16 %v2144, %v2144
    %v2147 = vshll.u32 %v2145, 16
    %v2149 = vrot.slane %v2147, 6
    %vm2151 = vsmask.f32 7946
    %vm2152 = vmand %vm1826, %vm2151
    %v2153 = vld [vmem:[#allocation2] sm:$0x4]
    %v2154 = vsel %vm2152, %v2149, %v2153
    %2155 = vst [vmem:[#allocation2] sm:$0x4] %v2154
    %v2157 = vrot.slane %v2145, 2
    %vm2159 = vsmask.f32 7962
    %vm2160 = vmand %vm1837, %vm2159
    %v2161 = vld [vmem:[#allocation2] sm:$0x40]
    %v2162 = vsel %vm2160, %v2157, %v2161
    %2163 = vst [vmem:[#allocation2] sm:$0x40] %v2162
    %v2164 = vld [vmem:[#allocation8] sm:$0xff]
    %v2165 = vld [vmem:[#allocation8 + $0x8] sm:$0xff]
    %v2166 = vld [vmem:[#allocation8 + $0x10] sm:$0xff]
    %v2167 = vld [vmem:[#allocation8 + $0x18] sm:$0xff]
    %v2168 = vld [vmem:[#allocation8 + $0x20] sm:$0xff]
    %v2169 = vld [vmem:[#allocation8 + $0x28] sm:$0xff]
    %v2170 = vld [vmem:[#allocation8 + $0x30] sm:$0xff]
    %v2171 = vld [vmem:[#allocation8 + $0x38] sm:$0xff]
    %v2172 = vld [vmem:[#allocation8 + $0x40] sm:$0xff]
    %v2173 = vld [vmem:[#allocation8 + $0x48] sm:$0xff]
    %v2174 = vld [vmem:[#allocation8 + $0x50] sm:$0xff]
    %v2175 = vld [vmem:[#allocation8 + $0x58] sm:$0xff]
    %v2176 = vld [vmem:[#allocation8 + $0x60] sm:$0xff]
    %v2177 = vld [vmem:[#allocation8 + $0x68] sm:$0xff]
    %v2178 = vld [vmem:[#allocation8 + $0x70] sm:$0xff]
    %v2179 = vld [vmem:[#allocation8 + $0x78] sm:$0xff]
    %v2180 = vld [vmem:[#allocation8 + $0x80] sm:$0xff]
    %v2181 = vld [vmem:[#allocation8 + $0x88] sm:$0xff]
    %v2182 = vld [vmem:[#allocation8 + $0x90] sm:$0xff]
    %v2183 = vld [vmem:[#allocation8 + $0x98] sm:$0xff]
    %v2184 = vld [vmem:[#allocation8 + $0xa0] sm:$0xff]
    %v2185 = vld [vmem:[#allocation8 + $0xa8] sm:$0xff]
    %v2186 = vld [vmem:[#allocation8 + $0xb0] sm:$0xff]
    %v2187 = vld [vmem:[#allocation8 + $0xb8] sm:$0xff]
    %v2188 = vld [vmem:[#allocation8 + $0xc0] sm:$0xff]
    %v2189 = vld [vmem:[#allocation8 + $0xc8] sm:$0xff]
    %v2190 = vld [vmem:[#allocation8 + $0xd0] sm:$0xff]
    %v2191 = vld [vmem:[#allocation8 + $0xd8] sm:$0xff]
    %v2192 = vld [vmem:[#allocation8 + $0xe0] sm:$0xff]
    %v2193 = vld [vmem:[#allocation8 + $0xe8] sm:$0xff]
    %v2194 = vld [vmem:[#allocation8 + $0xf0] sm:$0xff]
    %v2195 = vld [vmem:[#allocation8 + $0xf8] sm:$0xff]
    %v2228 = vunpack.c.l.b16 %v2164
    %v2229 = vunpack.c.h.b16 %v2164
    %v2230 = vunpack.c.l.b16 %v2165
    %v2231 = vunpack.c.h.b16 %v2165
    %v2232 = vunpack.c.l.b16 %v2166
    %v2233 = vunpack.c.h.b16 %v2166
    %v2234 = vunpack.c.l.b16 %v2167
    %v2235 = vunpack.c.h.b16 %v2167
    %v2236 = vunpack.c.l.b16 %v2168
    %v2237 = vunpack.c.h.b16 %v2168
    %v2238 = vunpack.c.l.b16 %v2169
    %v2239 = vunpack.c.h.b16 %v2169
    %v2240 = vunpack.c.l.b16 %v2170
    %v2241 = vunpack.c.h.b16 %v2170
    %v2242 = vunpack.c.l.b16 %v2171
    %v2243 = vunpack.c.h.b16 %v2171
    %v2244 = vunpack.c.l.b16 %v2172
    %v2245 = vunpack.c.h.b16 %v2172
    %v2246 = vunpack.c.l.b16 %v2173
    %v2247 = vunpack.c.h.b16 %v2173
    %v2248 = vunpack.c.l.b16 %v2174
    %v2249 = vunpack.c.h.b16 %v2174
    %v2250 = vunpack.c.l.b16 %v2175
    %v2251 = vunpack.c.h.b16 %v2175
    %v2252 = vunpack.c.l.b16 %v2176
    %v2253 = vunpack.c.h.b16 %v2176
    %v2254 = vunpack.c.l.b16 %v2177
    %v2255 = vunpack.c.h.b16 %v2177
    %v2256 = vunpack.c.l.b16 %v2178
    %v2257 = vunpack.c.h.b16 %v2178
    %v2258 = vunpack.c.l.b16 %v2179
    %v2259 = vunpack.c.h.b16 %v2179
    %v2260 = vunpack.c.l.b16 %v2180
    %v2261 = vunpack.c.h.b16 %v2180
    %v2262 = vunpack.c.l.b16 %v2181
    %v2263 = vunpack.c.h.b16 %v2181
    %v2264 = vunpack.c.l.b16 %v2182
    %v2265 = vunpack.c.h.b16 %v2182
    %v2266 = vunpack.c.l.b16 %v2183
    %v2267 = vunpack.c.h.b16 %v2183
    %v2268 = vunpack.c.l.b16 %v2184
    %v2269 = vunpack.c.h.b16 %v2184
    %v2270 = vunpack.c.l.b16 %v2185
    %v2271 = vunpack.c.h.b16 %v2185
    %v2272 = vunpack.c.l.b16 %v2186
    %v2273 = vunpack.c.h.b16 %v2186
    %v2274 = vunpack.c.l.b16 %v2187
    %v2275 = vunpack.c.h.b16 %v2187
    %v2276 = vunpack.c.l.b16 %v2188
    %v2277 = vunpack.c.h.b16 %v2188
    %v2278 = vunpack.c.l.b16 %v2189
    %v2279 = vunpack.c.h.b16 %v2189
    %v2280 = vunpack.c.l.b16 %v2190
    %v2281 = vunpack.c.h.b16 %v2190
    %v2282 = vunpack.c.l.b16 %v2191
    %v2283 = vunpack.c.h.b16 %v2191
    %v2284 = vunpack.c.l.b16 %v2192
    %v2285 = vunpack.c.h.b16 %v2192
    %v2286 = vunpack.c.l.b16 %v2193
    %v2287 = vunpack.c.h.b16 %v2193
    %v2288 = vunpack.c.l.b16 %v2194
    %v2289 = vunpack.c.h.b16 %v2194
    %v2290 = vunpack.c.l.b16 %v2195
    %v2291 = vunpack.c.h.b16 %v2195
    %v2292 = vpack.c.b16 %v2232, %v2228
    %v2293 = vpack.c.b16 %v2233, %v2229
    %v2294 = vpack.c.b16 %v2234, %v2230
    %v2295 = vpack.c.b16 %v2235, %v2231
    %v2296 = vpack.c.b16 %v2240, %v2236
    %v2297 = vpack.c.b16 %v2241, %v2237
    %v2298 = vpack.c.b16 %v2242, %v2238
    %v2299 = vpack.c.b16 %v2243, %v2239
    %v2300 = vpack.c.b16 %v2248, %v2244
    %v2301 = vpack.c.b16 %v2249, %v2245
    %v2302 = vpack.c.b16 %v2250, %v2246
    %v2303 = vpack.c.b16 %v2251, %v2247
    %v2304 = vpack.c.b16 %v2256, %v2252
    %v2305 = vpack.c.b16 %v2257, %v2253
    %v2306 = vpack.c.b16 %v2258, %v2254
    %v2307 = vpack.c.b16 %v2259, %v2255
    %v2308 = vpack.c.b16 %v2264, %v2260
    %v2309 = vpack.c.b16 %v2265, %v2261
    %v2310 = vpack.c.b16 %v2266, %v2262
    %v2311 = vpack.c.b16 %v2267, %v2263
    %v2312 = vpack.c.b16 %v2272, %v2268
    %v2313 = vpack.c.b16 %v2273, %v2269
    %v2314 = vpack.c.b16 %v2274, %v2270
    %v2315 = vpack.c.b16 %v2275, %v2271
    %v2316 = vpack.c.b16 %v2280, %v2276
    %v2317 = vpack.c.b16 %v2281, %v2277
    %v2318 = vpack.c.b16 %v2282, %v2278
    %v2319 = vpack.c.b16 %v2283, %v2279
    %v2320 = vpack.c.b16 %v2288, %v2284
    %v2321 = vpack.c.b16 %v2289, %v2285
    %v2322 = vpack.c.b16 %v2290, %v2286
    %v2323 = vpack.c.b16 %v2291, %v2287
    %2356 = vmatprep.subr.bf16.mxu0 %v2293
    %2357 = vmatpush1.bf16.msra.mxu0 %v2292
    %2358 = vmatprep.subr.bf16.mxu0 %v2297
    %2359 = vmatpush1.bf16.msra.mxu0 %v2296
    %2360 = vmatprep.subr.bf16.mxu0 %v2301
    %2361 = vmatpush1.bf16.msra.mxu0 %v2300
    %2362 = vmatprep.subr.bf16.mxu0 %v2305
    %2363 = vmatpush1.bf16.msra.mxu0 %v2304
    %2364 = vmatprep.subr.bf16.mxu0 %v2309
    %2365 = vmatpush1.bf16.msra.mxu0 %v2308
    %2366 = vmatprep.subr.bf16.mxu0 %v2313
    %2367 = vmatpush1.bf16.msra.mxu0 %v2312
    %2368 = vmatprep.subr.bf16.mxu0 %v2317
    %2369 = vmatpush1.bf16.msra.mxu0 %v2316
    %2370 = vmatprep.subr.bf16.mxu0 %v2321
    %2371 = vmatpush1.bf16.msra.mxu0 %v2320
    %2372 = vmatprep.subr.bf16.mxu0 0
    %2373 = vmatpush1.bf16.msra.mxu0 0
    %2374 = vmatprep.subr.bf16.mxu0 0
    %2375 = vmatpush1.bf16.msra.mxu0 0
    %2376 = vmatprep.subr.bf16.mxu0 0
    %2377 = vmatpush1.bf16.msra.mxu0 0
    %2378 = vmatprep.subr.bf16.mxu0 0
    %2379 = vmatpush1.bf16.msra.mxu0 0
    %2380 = vmatprep.subr.bf16.mxu0 0
    %2381 = vmatpush1.bf16.msra.mxu0 0
    %2382 = vmatprep.subr.bf16.mxu0 0
    %2383 = vmatpush1.bf16.msra.mxu0 0
    %2384 = vmatprep.subr.bf16.mxu0 0
    %2385 = vmatpush1.bf16.msra.mxu0 0
    %2386 = vmatprep.subr.bf16.mxu0 0
    %2387 = vmatpush1.bf16.msra.mxu0 0
    %2388 = vmatprep.mubr.bf16.mxu0 0
    %2389 = vmatmul.mubr.bf16.gmra.mrb[0].mxu0 %v2145
    %v2390 = vpop.f32.mrb[0].mxu0
    %v2391 = vadd.f32 0.0, %v2390
    %v2392 = vpop.f32.mrb[0].mxu0
    %v2393 = vadd.f32 0.0, %v2392
    %v2394 = vpop.f32.mrb[0].mxu0
    %v2395 = vpop.f32.mrb[0].mxu0
    %2396 = vdwg.mxu0
    %2397 = vmatprep.subr.bf16.mxu0 %v2295
    %2398 = vmatpush1.bf16.msra.mxu0 %v2294
    %2399 = vmatprep.subr.bf16.mxu0 %v2299
    %2400 = vmatpush1.bf16.msra.mxu0 %v2298
    %2401 = vmatprep.subr.bf16.mxu0 %v2303
    %2402 = vmatpush1.bf16.msra.mxu0 %v2302
    %2403 = vmatprep.subr.bf16.mxu0 %v2307
    %2404 = vmatpush1.bf16.msra.mxu0 %v2306
    %2405 = vmatprep.subr.bf16.mxu0 %v2311
    %2406 = vmatpush1.bf16.msra.mxu0 %v2310
    %2407 = vmatprep.subr.bf16.mxu0 %v2315
    %2408 = vmatpush1.bf16.msra.mxu0 %v2314
    %2409 = vmatprep.subr.bf16.mxu0 %v2319
    %2410 = vmatpush1.bf16.msra.mxu0 %v2318
    %2411 = vmatprep.subr.bf16.mxu0 %v2323
    %2412 = vmatpush1.bf16.msra.mxu0 %v2322
    %2413 = vmatprep.subr.bf16.mxu0 0
    %2414 = vmatpush1.bf16.msra.mxu0 0
    %2415 = vmatprep.subr.bf16.mxu0 0
    %2416 = vmatpush1.bf16.msra.mxu0 0
    %2417 = vmatprep.subr.bf16.mxu0 0
    %2418 = vmatpush1.bf16.msra.mxu0 0
    %2419 = vmatprep.subr.bf16.mxu0 0
    %2420 = vmatpush1.bf16.msra.mxu0 0
    %2421 = vmatprep.subr.bf16.mxu0 0
    %2422 = vmatpush1.bf16.msra.mxu0 0
    %2423 = vmatprep.subr.bf16.mxu0 0
    %2424 = vmatpush1.bf16.msra.mxu0 0
    %2425 = vmatprep.subr.bf16.mxu0 0
    %2426 = vmatpush1.bf16.msra.mxu0 0
    %2427 = vmatprep.subr.bf16.mxu0 0
    %2428 = vmatpush1.bf16.msra.mxu0 0
    %2429 = vmatprep.mubr.bf16.mxu0 0
    %2430 = vmatmul.mubr.bf16.gmra.mrb[0].mxu0 %v2145
    %v2431 = vpop.f32.mrb[0].mxu0
    %v2432 = vadd.f32 0.0, %v2431
    %v2433 = vpop.f32.mrb[0].mxu0
    %v2434 = vadd.f32 0.0, %v2433
    %v2435 = vpop.f32.mrb[0].mxu0
    %v2436 = vpop.f32.mrb[0].mxu0
    %2437 = vdwg.mxu0
    %v2438 = vadd.f32 %v189, %v2391
    %v2439 = vadd.f32 %v191, %v2393
    %v2440 = vadd.f32 %v230, %v2432
    %v2441 = vadd.f32 %v232, %v2434
    %v2442 = vxor.u32 %v2438, 2147483648
    %v2443 = vmul.f32 %v2442, 1.442695
    %v2444 = vpow.pop %v2443
    %v2445 = vadd.f32 %v2444, 1.0
    %v2446 = vrcp.pop %v2445
    %v2447 = vmul.f32 1.0, %v2446
    %v2448 = vxor.u32 %v2439, 2147483648
    %v2449 = vmul.f32 %v2448, 1.442695
    %v2450 = vpow.pop %v2449
    %v2451 = vadd.f32 %v2450, 1.0
    %v2452 = vrcp.pop %v2451
    %v2453 = vmul.f32 1.0, %v2452
    %v2454 = vtanh.pop %v2440
    %v2455 = vxor.u32 %v2441, 2147483648
    %v2456 = vmul.f32 %v2455, 1.442695
    %v2457 = vpow.pop %v2456
    %v2458 = vadd.f32 %v2457, 1.0
    %v2459 = vrcp.pop %v2458
    %v2460 = vmul.f32 1.0, %v2459
    %v2461 = vmul.f32 %v2453, %v2142
    %v2462 = vmul.f32 %v2447, %v2454
    %v2463 = vadd.f32 %v2461, %v2462
    %v2464 = vtanh.pop %v2463
    %v2465 = vmul.f32 %v2460, %v2464
    %v2466 = vpack.c.bf16 %v2465, %v2465
    %v2468 = vrot.slane %v2466, 5
    %vm2470 = vcmask 1043459
    %vm2471 = vsmask.f32 3328
    %vm2472 = vmand %vm2470, %vm2471
    %v2473 = vld [vmem:[#allocation2] sm:$0x8]
    %v2474 = vsel %vm2472, %v2468, %v2473
    %2475 = vst [vmem:[#allocation2] sm:$0x8] %v2474
    %v2477 = vshrl.u32 %v2466, 16
    %v2479 = vrot.slane %v2477, 1
    %vm2481 = vcmask 1047559
    %vm2482 = vsmask.f32 7424
    %vm2483 = vmand %vm2481, %vm2482
    %v2484 = vld [vmem:[#allocation2] sm:$0x80]
    %v2485 = vsel %vm2483, %v2479, %v2484
    %2486 = vst [vmem:[#allocation2] sm:$0x80] %v2485
    %v2487 = vld [vmem:[#allocation8] sm:$0xff]
    %v2488 = vld [vmem:[#allocation8 + $0x8] sm:$0xff]
    %v2489 = vld [vmem:[#allocation8 + $0x10] sm:$0xff]
    %v2490 = vld [vmem:[#allocation8 + $0x18] sm:$0xff]
    %v2491 = vld [vmem:[#allocation8 + $0x20] sm:$0xff]
    %v2492 = vld [vmem:[#allocation8 + $0x28] sm:$0xff]
    %v2493 = vld [vmem:[#allocation8 + $0x30] sm:$0xff]
    %v2494 = vld [vmem:[#allocation8 + $0x38] sm:$0xff]
    %v2495 = vld [vmem:[#allocation8 + $0x40] sm:$0xff]
    %v2496 = vld [vmem:[#allocation8 + $0x48] sm:$0xff]
    %v2497 = vld [vmem:[#allocation8 + $0x50] sm:$0xff]
    %v2498 = vld [vmem:[#allocation8 + $0x58] sm:$0xff]
    %v2499 = vld [vmem:[#allocation8 + $0x60] sm:$0xff]
    %v2500 = vld [vmem:[#allocation8 + $0x68] sm:$0xff]
    %v2501 = vld [vmem:[#allocation8 + $0x70] sm:$0xff]
    %v2502 = vld [vmem:[#allocation8 + $0x78] sm:$0xff]
    %v2503 = vld [vmem:[#allocation8 + $0x80] sm:$0xff]
    %v2504 = vld [vmem:[#allocation8 + $0x88] sm:$0xff]
    %v2505 = vld [vmem:[#allocation8 + $0x90] sm:$0xff]
    %v2506 = vld [vmem:[#allocation8 + $0x98] sm:$0xff]
    %v2507 = vld [vmem:[#allocation8 + $0xa0] sm:$0xff]
    %v2508 = vld [vmem:[#allocation8 + $0xa8] sm:$0xff]
    %v2509 = vld [vmem:[#allocation8 + $0xb0] sm:$0xff]
    %v2510 = vld [vmem:[#allocation8 + $0xb8] sm:$0xff]
    %v2511 = vld [vmem:[#allocation8 + $0xc0] sm:$0xff]
    %v2512 = vld [vmem:[#allocation8 + $0xc8] sm:$0xff]
    %v2513 = vld [vmem:[#allocation8 + $0xd0] sm:$0xff]
    %v2514 = vld [vmem:[#allocation8 + $0xd8] sm:$0xff]
    %v2515 = vld [vmem:[#allocation8 + $0xe0] sm:$0xff]
    %v2516 = vld [vmem:[#allocation8 + $0xe8] sm:$0xff]
    %v2517 = vld [vmem:[#allocation8 + $0xf0] sm:$0xff]
    %v2518 = vld [vmem:[#allocation8 + $0xf8] sm:$0xff]
    %v2551 = vunpack.c.l.b16 %v2487
    %v2552 = vunpack.c.h.b16 %v2487
    %v2553 = vunpack.c.l.b16 %v2488
    %v2554 = vunpack.c.h.b16 %v2488
    %v2555 = vunpack.c.l.b16 %v2489
    %v2556 = vunpack.c.h.b16 %v2489
    %v2557 = vunpack.c.l.b16 %v2490
    %v2558 = vunpack.c.h.b16 %v2490
    %v2559 = vunpack.c.l.b16 %v2491
    %v2560 = vunpack.c.h.b16 %v2491
    %v2561 = vunpack.c.l.b16 %v2492
    %v2562 = vunpack.c.h.b16 %v2492
    %v2563 = vunpack.c.l.b16 %v2493
    %v2564 = vunpack.c.h.b16 %v2493
    %v2565 = vunpack.c.l.b16 %v2494
    %v2566 = vunpack.c.h.b16 %v2494
    %v2567 = vunpack.c.l.b16 %v2495
    %v2568 = vunpack.c.h.b16 %v2495
    %v2569 = vunpack.c.l.b16 %v2496
    %v2570 = vunpack.c.h.b16 %v2496
    %v2571 = vunpack.c.l.b16 %v2497
    %v2572 = vunpack.c.h.b16 %v2497
    %v2573 = vunpack.c.l.b16 %v2498
    %v2574 = vunpack.c.h.b16 %v2498
    %v2575 = vunpack.c.l.b16 %v2499
    %v2576 = vunpack.c.h.b16 %v2499
    %v2577 = vunpack.c.l.b16 %v2500
    %v2578 = vunpack.c.h.b16 %v2500
    %v2579 = vunpack.c.l.b16 %v2501
    %v2580 = vunpack.c.h.b16 %v2501
    %v2581 = vunpack.c.l.b16 %v2502
    %v2582 = vunpack.c.h.b16 %v2502
    %v2583 = vunpack.c.l.b16 %v2503
    %v2584 = vunpack.c.h.b16 %v2503
    %v2585 = vunpack.c.l.b16 %v2504
    %v2586 = vunpack.c.h.b16 %v2504
    %v2587 = vunpack.c.l.b16 %v2505
    %v2588 = vunpack.c.h.b16 %v2505
    %v2589 = vunpack.c.l.b16 %v2506
    %v2590 = vunpack.c.h.b16 %v2506
    %v2591 = vunpack.c.l.b16 %v2507
    %v2592 = vunpack.c.h.b16 %v2507
    %v2593 = vunpack.c.l.b16 %v2508
    %v2594 = vunpack.c.h.b16 %v2508
    %v2595 = vunpack.c.l.b16 %v2509
    %v2596 = vunpack.c.h.b16 %v2509
    %v2597 = vunpack.c.l.b16 %v2510
    %v2598 = vunpack.c.h.b16 %v2510
    %v2599 = vunpack.c.l.b16 %v2511
    %v2600 = vunpack.c.h.b16 %v2511
    %v2601 = vunpack.c.l.b16 %v2512
    %v2602 = vunpack.c.h.b16 %v2512
    %v2603 = vunpack.c.l.b16 %v2513
    %v2604 = vunpack.c.h.b16 %v2513
    %v2605 = vunpack.c.l.b16 %v2514
    %v2606 = vunpack.c.h.b16 %v2514
    %v2607 = vunpack.c.l.b16 %v2515
    %v2608 = vunpack.c.h.b16 %v2515
    %v2609 = vunpack.c.l.b16 %v2516
    %v2610 = vunpack.c.h.b16 %v2516
    %v2611 = vunpack.c.l.b16 %v2517
    %v2612 = vunpack.c.h.b16 %v2517
    %v2613 = vunpack.c.l.b16 %v2518
    %v2614 = vunpack.c.h.b16 %v2518
    %v2615 = vpack.c.b16 %v2555, %v2551
    %v2616 = vpack.c.b16 %v2556, %v2552
    %v2617 = vpack.c.b16 %v2557, %v2553
    %v2618 = vpack.c.b16 %v2558, %v2554
    %v2619 = vpack.c.b16 %v2563, %v2559
    %v2620 = vpack.c.b16 %v2564, %v2560
    %v2621 = vpack.c.b16 %v2565, %v2561
    %v2622 = vpack.c.b16 %v2566, %v2562
    %v2623 = vpack.c.b16 %v2571, %v2567
    %v2624 = vpack.c.b16 %v2572, %v2568
    %v2625 = vpack.c.b16 %v2573, %v2569
    %v2626 = vpack.c.b16 %v2574, %v2570
    %v2627 = vpack.c.b16 %v2579, %v2575
    %v2628 = vpack.c.b16 %v2580, %v2576
    %v2629 = vpack.c.b16 %v2581, %v2577
    %v2630 = vpack.c.b16 %v2582, %v2578
    %v2631 = vpack.c.b16 %v2587, %v2583
    %v2632 = vpack.c.b16 %v2588, %v2584
    %v2633 = vpack.c.b16 %v2589, %v2585
    %v2634 = vpack.c.b16 %v2590, %v2586
    %v2635 = vpack.c.b16 %v2595, %v2591
    %v2636 = vpack.c.b16 %v2596, %v2592
    %v2637 = vpack.c.b16 %v2597, %v2593
    %v2638 = vpack.c.b16 %v2598, %v2594
    %v2639 = vpack.c.b16 %v2603, %v2599
    %v2640 = vpack.c.b16 %v2604, %v2600
    %v2641 = vpack.c.b16 %v2605, %v2601
    %v2642 = vpack.c.b16 %v2606, %v2602
    %v2643 = vpack.c.b16 %v2611, %v2607
    %v2644 = vpack.c.b16 %v2612, %v2608
    %v2645 = vpack.c.b16 %v2613, %v2609
    %v2646 = vpack.c.b16 %v2614, %v2610
    %2679 = vmatprep.subr.bf16.mxu0 %v2616
    %2680 = vmatpush1.bf16.msra.mxu0 %v2615
    %2681 = vmatprep.subr.bf16.mxu0 %v2620
    %2682 = vmatpush1.bf16.msra.mxu0 %v2619
    %2683 = vmatprep.subr.bf16.mxu0 %v2624
    %2684 = vmatpush1.bf16.msra.mxu0 %v2623
    %2685 = vmatprep.subr.bf16.mxu0 %v2628
    %2686 = vmatpush1.bf16.msra.mxu0 %v2627
    %2687 = vmatprep.subr.bf16.mxu0 %v2632
    %2688 = vmatpush1.bf16.msra.mxu0 %v2631
    %2689 = vmatprep.subr.bf16.mxu0 %v2636
    %2690 = vmatpush1.bf16.msra.mxu0 %v2635
    %2691 = vmatprep.subr.bf16.mxu0 %v2640
    %2692 = vmatpush1.bf16.msra.mxu0 %v2639
    %2693 = vmatprep.subr.bf16.mxu0 %v2644
    %2694 = vmatpush1.bf16.msra.mxu0 %v2643
    %2695 = vmatprep.subr.bf16.mxu0 0
    %2696 = vmatpush1.bf16.msra.mxu0 0
    %2697 = vmatprep.subr.bf16.mxu0 0
    %2698 = vmatpush1.bf16.msra.mxu0 0
    %2699 = vmatprep.subr.bf16.mxu0 0
    %2700 = vmatpush1.bf16.msra.mxu0 0
    %2701 = vmatprep.subr.bf16.mxu0 0
    %2702 = vmatpush1.bf16.msra.mxu0 0
    %2703 = vmatprep.subr.bf16.mxu0 0
    %2704 = vmatpush1.bf16.msra.mxu0 0
    %2705 = vmatprep.subr.bf16.mxu0 0
    %2706 = vmatpush1.bf16.msra.mxu0 0
    %2707 = vmatprep.subr.bf16.mxu0 0
    %2708 = vmatpush1.bf16.msra.mxu0 0
    %2709 = vmatprep.subr.bf16.mxu0 0
    %2710 = vmatpush1.bf16.msra.mxu0 0
    %2711 = vmatprep.mubr.bf16.mxu0 0
    %2712 = vmatmul.mubr.bf16.gmra.mrb[0].mxu0 %v2466
    %v2713 = vpop.f32.mrb[0].mxu0
    %v2714 = vadd.f32 0.0, %v2713
    %v2715 = vpop.f32.mrb[0].mxu0
    %v2716 = vadd.f32 0.0, %v2715
    %v2717 = vpop.f32.mrb[0].mxu0
    %v2718 = vpop.f32.mrb[0].mxu0
    %2719 = vdwg.mxu0
    %2720 = vmatprep.subr.bf16.mxu0 %v2618
    %2721 = vmatpush1.bf16.msra.mxu0 %v2617
    %2722 = vmatprep.subr.bf16.mxu0 %v2622
    %2723 = vmatpush1.bf16.msra.mxu0 %v2621
    %2724 = vmatprep.subr.bf16.mxu0 %v2626
    %2725 = vmatpush1.bf16.msra.mxu0 %v2625
    %2726 = vmatprep.subr.bf16.mxu0 %v2630
    %2727 = vmatpush1.bf16.msra.mxu0 %v2629
    %2728 = vmatprep.subr.bf16.mxu0 %v2634
    %2729 = vmatpush1.bf16.msra.mxu0 %v2633
    %2730 = vmatprep.subr.bf16.mxu0 %v2638
    %2731 = vmatpush1.bf16.msra.mxu0 %v2637
    %2732 = vmatprep.subr.bf16.mxu0 %v2642
    %2733 = vmatpush1.bf16.msra.mxu0 %v2641
    %2734 = vmatprep.subr.bf16.mxu0 %v2646
    %2735 = vmatpush1.bf16.msra.mxu0 %v2645
    %2736 = vmatprep.subr.bf16.mxu0 0
    %2737 = vmatpush1.bf16.msra.mxu0 0
    %2738 = vmatprep.subr.bf16.mxu0 0
    %2739 = vmatpush1.bf16.msra.mxu0 0
    %2740 = vmatprep.subr.bf16.mxu0 0
    %2741 = vmatpush1.bf16.msra.mxu0 0
    %2742 = vmatprep.subr.bf16.mxu0 0
    %2743 = vmatpush1.bf16.msra.mxu0 0
    %2744 = vmatprep.subr.bf16.mxu0 0
    %2745 = vmatpush1.bf16.msra.mxu0 0
    %2746 = vmatprep.subr.bf16.mxu0 0
    %2747 = vmatpush1.bf16.msra.mxu0 0
    %2748 = vmatprep.subr.bf16.mxu0 0
    %2749 = vmatpush1.bf16.msra.mxu0 0
    %2750 = vmatprep.subr.bf16.mxu0 0
    %2751 = vmatpush1.bf16.msra.mxu0 0
    %2752 = vmatprep.mubr.bf16.mxu0 0
    %2753 = vmatmul.mubr.bf16.gmra.mrb[0].mxu0 %v2466
    %v2754 = vpop.f32.mrb[0].mxu0
    %v2755 = vadd.f32 0.0, %v2754
    %v2756 = vpop.f32.mrb[0].mxu0
    %v2757 = vadd.f32 0.0, %v2756
    %v2758 = vpop.f32.mrb[0].mxu0
    %v2759 = vpop.f32.mrb[0].mxu0
    %2760 = vdwg.mxu0
    %v2761 = vadd.f32 %v189, %v2714
    %v2762 = vadd.f32 %v191, %v2716
    %v2763 = vadd.f32 %v230, %v2755
    %v2764 = vadd.f32 %v232, %v2757
    %v2765 = vxor.u32 %v2761, 2147483648
    %v2766 = vmul.f32 %v2765, 1.442695
    %v2767 = vpow.pop %v2766
    %v2768 = vadd.f32 %v2767, 1.0
    %v2769 = vrcp.pop %v2768
    %v2770 = vmul.f32 1.0, %v2769
    %v2771 = vxor.u32 %v2762, 2147483648
    %v2772 = vmul.f32 %v2771, 1.442695
    %v2773 = vpow.pop %v2772
    %v2774 = vadd.f32 %v2773, 1.0
    %v2775 = vrcp.pop %v2774
    %v2776 = vmul.f32 1.0, %v2775
    %v2777 = vtanh.pop %v2763
    %v2778 = vxor.u32 %v2764, 2147483648
    %v2779 = vmul.f32 %v2778, 1.442695
    %v2780 = vpow.pop %v2779
    %v2781 = vadd.f32 %v2780, 1.0
    %v2782 = vrcp.pop %v2781
    %v2783 = vmul.f32 1.0, %v2782
    %v2784 = vmul.f32 %v2776, %v2463
    %v2785 = vmul.f32 %v2770, %v2777
    %v2786 = vadd.f32 %v2784, %v2785
    %v2787 = vtanh.pop %v2786
    %v2788 = vmul.f32 %v2783, %v2787
    %v2789 = vpack.c.bf16 %v2788, %v2788
    %v2791 = vshll.u32 %v2789, 16
    %v2793 = vrot.slane %v2791, 5
    %vm2795 = vsmask.f32 7950
    %vm2796 = vmand %vm2470, %vm2795
    %v2797 = vld [vmem:[#allocation2] sm:$0x8]
    %v2798 = vsel %vm2796, %v2793, %v2797
    %2799 = vst [vmem:[#allocation2] sm:$0x8] %v2798
    %v2801 = vrot.slane %v2789, 1
    %vm2803 = vsmask.f32 7966
    %vm2804 = vmand %vm2481, %vm2803
    %v2805 = vld [vmem:[#allocation2] sm:$0x80]
    %v2806 = vsel %vm2804, %v2801, %v2805
    %2807 = vst [vmem:[#allocation2] sm:$0x80] %v2806
    %v2808 = vld [vmem:[#allocation2] sm:$0xff]
    %v2809 = vld [vmem:[#allocation9] sm:$0xf]
    %v2810 = vld [vmem:[#allocation9 + $0x4] sm:$0xf]
    %v2811 = vld [vmem:[#allocation9 + $0x8] sm:$0xf]
    %v2812 = vld [vmem:[#allocation9 + $0xc] sm:$0xf]
    %v2813 = vld [vmem:[#allocation9 + $0x10] sm:$0xf]
    %v2814 = vld [vmem:[#allocation9 + $0x14] sm:$0xf]
    %v2815 = vld [vmem:[#allocation9 + $0x18] sm:$0xf]
    %v2816 = vld [vmem:[#allocation9 + $0x1c] sm:$0xf]
    %v2817 = vld [vmem:[#allocation9 + $0x20] sm:$0xf]
    %v2818 = vld [vmem:[#allocation9 + $0x24] sm:$0xf]
    %v2819 = vld [vmem:[#allocation9 + $0x28] sm:$0xf]
    %v2820 = vld [vmem:[#allocation9 + $0x2c] sm:$0xf]
    %v2821 = vld [vmem:[#allocation9 + $0x30] sm:$0xf]
    %v2822 = vld [vmem:[#allocation9 + $0x34] sm:$0xf]
    %v2823 = vld [vmem:[#allocation9 + $0x38] sm:$0xf]
    %v2824 = vld [vmem:[#allocation9 + $0x3c] sm:$0xf]
    %v2825 = vld [vmem:[%s5] sm:$0x1]
    %v2827 = vlaneseq
    %v2828 = vshrl.u32 %v2827, 7
    %v2829 = vsub.s32 0, %v2828
    %v2830 = vrot.slane %v2825, %v2829
    %v2848 = vunpack.c.l.b16 %v2809
    %v2849 = vunpack.c.l.b16 %v2810
    %v2850 = vunpack.c.l.b16 %v2811
    %v2851 = vunpack.c.l.b16 %v2812
    %v2852 = vunpack.c.l.b16 %v2813
    %v2853 = vunpack.c.l.b16 %v2814
    %v2854 = vunpack.c.l.b16 %v2815
    %v2855 = vunpack.c.l.b16 %v2816
    %v2856 = vunpack.c.l.b16 %v2817
    %v2857 = vunpack.c.l.b16 %v2818
    %v2858 = vunpack.c.l.b16 %v2819
    %v2859 = vunpack.c.l.b16 %v2820
    %v2860 = vunpack.c.l.b16 %v2821
    %v2861 = vunpack.c.l.b16 %v2822
    %v2862 = vunpack.c.l.b16 %v2823
    %v2863 = vunpack.c.l.b16 %v2824
    %v2864 = vpack.c.b16 %v2849, %v2848
    %v2865 = vpack.c.b16 %v2851, %v2850
    %v2866 = vpack.c.b16 %v2853, %v2852
    %v2867 = vpack.c.b16 %v2855, %v2854
    %v2868 = vpack.c.b16 %v2857, %v2856
    %v2869 = vpack.c.b16 %v2859, %v2858
    %v2870 = vpack.c.b16 %v2861, %v2860
    %v2871 = vpack.c.b16 %v2863, %v2862
    %2880 = vmatprep.subr.bf16.mxu0 0
    %2881 = vmatpush1.bf16.msra.mxu0 %v2864
    %2882 = vmatprep.subr.bf16.mxu0 0
    %2883 = vmatpush1.bf16.msra.mxu0 %v2865
    %2884 = vmatprep.subr.bf16.mxu0 0
    %2885 = vmatpush1.bf16.msra.mxu0 %v2866
    %2886 = vmatprep.subr.bf16.mxu0 0
    %2887 = vmatpush1.bf16.msra.mxu0 %v2867
    %2888 = vmatprep.subr.bf16.mxu0 0
    %2889 = vmatpush1.bf16.msra.mxu0 %v2868
    %2890 = vmatprep.subr.bf16.mxu0 0
    %2891 = vmatpush1.bf16.msra.mxu0 %v2869
    %2892 = vmatprep.subr.bf16.mxu0 0
    %2893 = vmatpush1.bf16.msra.mxu0 %v2870
    %2894 = vmatprep.subr.bf16.mxu0 0
    %2895 = vmatpush1.bf16.msra.mxu0 %v2871
    %2896 = vmatprep.subr.bf16.mxu0 0
    %2897 = vmatpush1.bf16.msra.mxu0 0
    %2898 = vmatprep.subr.bf16.mxu0 0
    %2899 = vmatpush1.bf16.msra.mxu0 0
    %2900 = vmatprep.subr.bf16.mxu0 0
    %2901 = vmatpush1.bf16.msra.mxu0 0
    %2902 = vmatprep.subr.bf16.mxu0 0
    %2903 = vmatpush1.bf16.msra.mxu0 0
    %2904 = vmatprep.subr.bf16.mxu0 0
    %2905 = vmatpush1.bf16.msra.mxu0 0
    %2906 = vmatprep.subr.bf16.mxu0 0
    %2907 = vmatpush1.bf16.msra.mxu0 0
    %2908 = vmatprep.subr.bf16.mxu0 0
    %2909 = vmatpush1.bf16.msra.mxu0 0
    %2910 = vmatprep.subr.bf16.mxu0 0
    %2911 = vmatpush1.bf16.msra.mxu0 0
    %2912 = vmatprep.mubr.bf16.mxu0 0
    %2913 = vmatmul.mubr.bf16.gmra.mrb[0].mxu0 %v2808
    %v2914 = vpop.f32.mrb[0].mxu0
    %v2915 = vadd.f32 %v2830, %v2914
    %v2916 = vpop.f32.mrb[0].mxu0
    %v2917 = vpop.f32.mrb[0].mxu0
    %v2918 = vadd.f32 %v2830, %v2917
    %v2919 = vpop.f32.mrb[0].mxu0
    %2920 = vdwg.mxu0
    %v2921 = vxor.u32 %v2915, 2147483648
    %v2922 = vxor.u32 %v2918, 2147483648
    %v2923 = vmul.f32 %v2921, 1.442695
    %v2924 = vpow.pop %v2923
    %v2925 = vmul.f32 %v2922, 1.442695
    %v2926 = vpow.pop %v2925
    %v2927 = vadd.f32 %v2924, 1.0
    %v2928 = vadd.f32 %v2926, 1.0
    %v2929 = vrcp.pop %v2927
    %v2930 = vmul.f32 1.0, %v2929
    %v2931 = vrcp.pop %v2928
    %v2932 = vmul.f32 1.0, %v2931
    %2933 = vst [vmem:[#allocation11] sm:$0xff] %v2930
    %2934 = vst [vmem:[#allocation11 + $0x8] sm:$0xff] %v2932
    // Predicated region
    $region42: #{tpu_custom_call.1} parent=1 // pred_check
      _
    $region43: #{tpu_custom_call.1} parent=1 // pred_check_branch
      %2936 = sbr.rel (0) target = $region45
    $region44: #{tpu_custom_call.1} parent=1 // pred_region
      %s2938 = ssub.s32 256, 256
      %2939 = vsyncadd [#allocation5], %s2938
      %s2940 = sshll.u32 [#allocation11], 4
      %s2941 = int_to_ptr.vmem [resolvable:$true] %s2940
      %2946 = dma.vmem_to_hbm [thread:$0]  %s2941, 256, %s6, [#allocation5], 128, 128, 8
    $region45: #{tpu_custom_call.1} parent=1 // pred_fallthru
      _
    // Predicated region
    $region46: #{tpu_custom_call.1} parent=1 // pred_check
      _
    $region47: #{tpu_custom_call.1} parent=1 // pred_check_branch
      %2948 = sbr.rel (0) target = $region49
    $region48: #{tpu_custom_call.1} parent=1 // pred_region
      %2949 = dma.done [#allocation5], 256
    $region49: #{tpu_custom_call.1} parent=1 // pred_fallthru
      _
    %2950 = vsyncpa [#allocation4], 1
    %2951 = vsyncpa [#allocation7], 1
    %2952 = vsyncpa [#allocation10], 1
    %2953 = vsyncpa [#allocation5], 1

</llo_original>
